<compile_context>
chip_gen: v7x
topology: tpu7x:2x2x1
jax: 0.10.0
libtpu: 0.0.40
codegen_flags: <defaults>
</compile_context>

<pallas_src>
import jax
import jax.numpy as jnp
from jax.experimental import pallas as pl
from jax.experimental.pallas import tpu as pltpu

IN_F = 784          # 28 * 28 flattened input features
HID = 300           # logical hidden size
HID_PAD = 384       # hidden padded to a multiple of 128
OUT = 10            # logical number of classes
OUT_PAD = 128       # output lane dim padded to 128
TB_MAX = 1024       # max batch tile (rows per grid step)


def _mlp_kernel(x_ref, w1_ref, b1_ref, w2_ref, b2_ref, o_ref):
    # x_ref : (TB, 784)      f32   (bf16 cast done here -> no extra HBM pass)
    # w1_ref: (784, 384)     bf16  (cols 300:384 are zero)
    # b1_ref: (1, 384)       f32   (entries 300:384 are zero)
    # w2_ref: (384, 128)     bf16  (rows 300:384 and cols 10:128 are zero)
    # b2_ref: (1, 128)       f32   (entries 10:128 are zero)
    # o_ref : (TB, 128)      bf16
    x = x_ref[...].astype(jnp.bfloat16)
    h = jnp.dot(x, w1_ref[...], preferred_element_type=jnp.float32)
    h = jnp.maximum(h + b1_ref[...], 0.0)          # ReLU (padded lanes stay 0)
    o = jnp.dot(h.astype(jnp.bfloat16), w2_ref[...],
                preferred_element_type=jnp.float32)
    o_ref[...] = (o + b2_ref[...]).astype(jnp.bfloat16)


def _round_up(n, m):
    return ((n + m - 1) // m) * m


def _pick_tile(B):
    """Batch tile: multiple of 16 (bf16 sublane packing); >=2 grid steps for B>32
    so v7x's two TensorCores both get work; capped at TB_MAX."""
    if B <= 32:
        return max(16, _round_up(B, 16))
    return min(TB_MAX, _round_up(pl.cdiv(B, 2), 16))


def prepare_params(w1, b1, w2, b2):
    """Pad params to lane-aligned shapes; cast matmul operands to bf16.

    Inputs (logical, (in, out) layout):
      w1: (784, 300), b1: (1, 300) or (300,)
      w2: (300, 10),  b2: (1, 10)  or (10,)
    """
    b1 = jnp.asarray(b1, jnp.float32).reshape(1, HID)
    b2 = jnp.asarray(b2, jnp.float32).reshape(1, OUT)

    w1p = jnp.zeros((IN_F, HID_PAD), jnp.bfloat16)
    w1p = w1p.at[:, :HID].set(jnp.asarray(w1, jnp.float32).astype(jnp.bfloat16))
    b1p = jnp.zeros((1, HID_PAD), jnp.float32).at[:, :HID].set(b1)

    w2p = jnp.zeros((HID_PAD, OUT_PAD), jnp.bfloat16)
    w2p = w2p.at[:HID, :OUT].set(jnp.asarray(w2, jnp.float32).astype(jnp.bfloat16))
    b2p = jnp.zeros((1, OUT_PAD), jnp.float32).at[:, :OUT].set(b2)
    return w1p, b1p, w2p, b2p


@jax.jit
def lenet300_hidden_only(x, w1p, b1p, w2p, b2p):
    """x: (B, C, H, W) or (B, 784). Params from prepare_params(). Returns (B, 10) f32 logits."""
    B = x.shape[0]
    x2d = x.reshape(B, -1).astype(jnp.float32)    # x.view(x.size(0), -1); cast to bf16 in-kernel
    assert x2d.shape[1] == IN_F, f"expected {IN_F} features, got {x2d.shape[1]}"

    tb = _pick_tile(B)
    grid = (pl.cdiv(B, tb),)                      # partial last block; no jnp.pad copy of x

    cost = pl.CostEstimate(
        flops=2 * B * (IN_F * HID_PAD + HID_PAD * OUT_PAD),
        transcendentals=0,
        bytes_accessed=(
            B * IN_F * 4                                   # x stream (f32, read once)
            + IN_F * HID_PAD * 2 + HID_PAD * OUT_PAD * 2   # weights (bf16, resident)
            + HID_PAD * 4 + OUT_PAD * 4                    # biases (f32)
            + B * OUT_PAD * 2                              # output (bf16)
        ),
    )

    out = pl.pallas_call(
        _mlp_kernel,
        out_shape=jax.ShapeDtypeStruct((B, OUT_PAD), jnp.bfloat16),
        grid_spec=pltpu.PrefetchScalarGridSpec(
            num_scalar_prefetch=0,
            grid=grid,
            in_specs=[
                pl.BlockSpec((tb, IN_F), lambda i: (i, 0)),          # x: tiled over batch
                pl.BlockSpec((IN_F, HID_PAD), lambda i: (0, 0)),     # w1: resident
                pl.BlockSpec((1, HID_PAD), lambda i: (0, 0)),        # b1: resident
                pl.BlockSpec((HID_PAD, OUT_PAD), lambda i: (0, 0)),  # w2: resident
                pl.BlockSpec((1, OUT_PAD), lambda i: (0, 0)),        # b2: resident
            ],
            out_specs=pl.BlockSpec((tb, OUT_PAD), lambda i: (i, 0)),
        ),
        compiler_params=pltpu.CompilerParams(
            dimension_semantics=("parallel",),
            vmem_limit_bytes=32 * 1024 * 1024,
        ),
        cost_estimate=cost,
    )(x2d, w1p, b1p, w2p, b2p)

    return out[:, :OUT].astype(jnp.float32)


def init_params(key):
    """Deterministic init matching nn.Linear defaults, stored as (in, out)."""
    k1, k2, k3, k4 = jax.random.split(key, 4)
    bound1 = 1.0 / jnp.sqrt(784.0)
    bound2 = 1.0 / jnp.sqrt(300.0)
    w1 = jax.random.uniform(k1, (IN_F, HID), jnp.float32, -bound1, bound1)
    b1 = jax.random.uniform(k2, (1, HID), jnp.float32, -bound1, bound1)
    w2 = jax.random.uniform(k3, (HID, OUT), jnp.float32, -bound2, bound2)
    b2 = jax.random.uniform(k4, (1, OUT), jnp.float32, -bound2, bound2)
    return w1, b1, w2, b2


if __name__ == "__main__":
    key = jax.random.PRNGKey(0)
    kx, kp = jax.random.split(key)

    # MNIST-like input, NCHW: batch=2, 1 channel, 28x28 -> 784 features.
    x = jax.random.normal(kx, (2, 1, 28, 28), jnp.float32)
    w1, b1, w2, b2 = init_params(kp)
    w1p, b1p, w2p, b2p = prepare_params(w1, b1, w2, b2)

    out = lenet300_hidden_only(x, w1p, b1p, w2p, b2p)
    out = jax.block_until_ready(out)

    # Pure-JAX f32 reference (kernel uses bf16 operands / bf16 output with f32
    # accumulation, hence the loosened tolerance).
    x2d = x.reshape(x.shape[0], -1)
    ref = jnp.maximum(x2d @ w1 + b1, 0.0) @ w2 + b2
    assert out.shape == (2, 10), out.shape
    assert jnp.allclose(out, ref, atol=3e-2, rtol=3e-2), "mismatch vs reference"

    print("KERNEL_OK")
</pallas_src>

<mosaic_0001>
module attributes {stable_mosaic.version = 11 : i64} {
  func.func @_mlp_kernel(%arg0: i32, %arg1: memref<16x784xf32, #tpu.memory_space<vmem>>, %arg2: memref<784x384xbf16, #tpu.memory_space<vmem>>, %arg3: memref<1x384xf32, #tpu.memory_space<vmem>>, %arg4: memref<384x128xbf16, #tpu.memory_space<vmem>>, %arg5: memref<1x128xf32, #tpu.memory_space<vmem>>, %arg6: memref<16x128xbf16, #tpu.memory_space<vmem>>) attributes {dimension_semantics = [#tpu.dimension_semantics<parallel>], iteration_bounds = array<i64: 1>, scalar_prefetch = 0 : i64, scratch_operands = 0 : i64, tpu.core_type = #tpu.core_type<tc>, window_params = [{transform_indices = @transform_0, window_bounds = array<i64: 16, 784>}, {pipeline_mode = #tpu.pipeline_mode<synchronous>, transform_indices = @transform_1, window_bounds = array<i64: 784, 384>}, {pipeline_mode = #tpu.pipeline_mode<synchronous>, transform_indices = @transform_2, window_bounds = array<i64: 1, 384>}, {pipeline_mode = #tpu.pipeline_mode<synchronous>, transform_indices = @transform_3, window_bounds = array<i64: 384, 128>}, {pipeline_mode = #tpu.pipeline_mode<synchronous>, transform_indices = @transform_4, window_bounds = array<i64: 1, 128>}, {transform_indices = @transform_5, window_bounds = array<i64: 16, 128>}]} {
    %c0 = arith.constant 0 : index
    %c0_0 = arith.constant 0 : index
    %0 = vector.load %arg1[%c0, %c0_0] : memref<16x784xf32, #tpu.memory_space<vmem>>, vector<16x784xf32>
    %1 = arith.truncf %0 : vector<16x784xf32> to vector<16x784xbf16>
    %c0_1 = arith.constant 0 : index
    %c0_2 = arith.constant 0 : index
    %2 = vector.load %arg2[%c0_1, %c0_2] : memref<784x384xbf16, #tpu.memory_space<vmem>>, vector<784x384xbf16>
    %cst = arith.constant dense<0.000000e+00> : vector<16x384xf32>
    %3 = tpu.matmul %1, %2, %cst {dimension_numbers = #tpu.dot_dimension_numbers<[1], [0], [0], [1], [0, 0, 1, 1], [], []>} : vector<16x784xbf16>, vector<784x384xbf16>, vector<16x384xf32> -> vector<16x384xf32>
    %c0_3 = arith.constant 0 : index
    %c0_4 = arith.constant 0 : index
    %4 = vector.load %arg3[%c0_3, %c0_4] : memref<1x384xf32, #tpu.memory_space<vmem>>, vector<1x384xf32>
    %5 = vector.broadcast %4 : vector<1x384xf32> to vector<16x384xf32>
    %6 = arith.addf %3, %5 : vector<16x384xf32>
    %cst_5 = arith.constant 0.000000e+00 : f32
    %7 = vector.broadcast %cst_5 : f32 to vector<16x384xf32>
    %8 = arith.maximumf %6, %7 : vector<16x384xf32>
    %9 = arith.truncf %8 : vector<16x384xf32> to vector<16x384xbf16>
    %c0_6 = arith.constant 0 : index
    %c0_7 = arith.constant 0 : index
    %10 = vector.load %arg4[%c0_6, %c0_7] : memref<384x128xbf16, #tpu.memory_space<vmem>>, vector<384x128xbf16>
    %cst_8 = arith.constant dense<0.000000e+00> : vector<16x128xf32>
    %11 = tpu.matmul %9, %10, %cst_8 {dimension_numbers = #tpu.dot_dimension_numbers<[1], [0], [0], [1], [0, 0, 1, 1], [], []>} : vector<16x384xbf16>, vector<384x128xbf16>, vector<16x128xf32> -> vector<16x128xf32>
    %c0_9 = arith.constant 0 : index
    %c0_10 = arith.constant 0 : index
    %12 = vector.load %arg5[%c0_9, %c0_10] : memref<1x128xf32, #tpu.memory_space<vmem>>, vector<1x128xf32>
    %13 = vector.broadcast %12 : vector<1x128xf32> to vector<16x128xf32>
    %14 = arith.addf %11, %13 : vector<16x128xf32>
    %15 = arith.truncf %14 : vector<16x128xf32> to vector<16x128xbf16>
    %c0_11 = arith.constant 0 : index
    %c0_12 = arith.constant 0 : index
    %16 = vector.load %arg6[%c0_11, %c0_12] : memref<16x128xbf16, #tpu.memory_space<vmem>>, vector<16x128xbf16>
    tpu.vector_store %arg6[%c0_11, %c0_12], %15 {strides = array<i32>} : memref<16x128xbf16, #tpu.memory_space<vmem>>, vector<16x128xbf16>,
    return
  }
  func.func @transform_0(%arg0: i32) -> (i32, i32) {
    %c0_i32 = arith.constant 0 : i32
    %c0_i32_0 = arith.constant 0 : i32
    return %arg0, %c0_i32 : i32, i32
  }
  func.func @transform_1(%arg0: i32) -> (i32, i32) {
    %c0_i32 = arith.constant 0 : i32
    %c0_i32_0 = arith.constant 0 : i32
    %c0_i32_1 = arith.constant 0 : i32
    return %c0_i32, %c0_i32_0 : i32, i32
  }
  func.func @transform_2(%arg0: i32) -> (i32, i32) {
    %c0_i32 = arith.constant 0 : i32
    %c0_i32_0 = arith.constant 0 : i32
    %c0_i32_1 = arith.constant 0 : i32
    return %c0_i32, %c0_i32_0 : i32, i32
  }
  func.func @transform_3(%arg0: i32) -> (i32, i32) {
    %c0_i32 = arith.constant 0 : i32
    %c0_i32_0 = arith.constant 0 : i32
    %c0_i32_1 = arith.constant 0 : i32
    return %c0_i32, %c0_i32_0 : i32, i32
  }
  func.func @transform_4(%arg0: i32) -> (i32, i32) {
    %c0_i32 = arith.constant 0 : i32
    %c0_i32_0 = arith.constant 0 : i32
    %c0_i32_1 = arith.constant 0 : i32
    return %c0_i32, %c0_i32_0 : i32, i32
  }
  func.func @transform_5(%arg0: i32) -> (i32, i32) {
    %c0_i32 = arith.constant 0 : i32
    %c0_i32_0 = arith.constant 0 : i32
    return %arg0, %c0_i32 : i32, i32
  }
}

</mosaic_0001>

<llo_original>
// kernel: lenet300_hidden_only.1
$region0: #{lenet300_hidden_only.1}
  #allocation0 [shape = 'u32[]', space=smem, size = 0x4, offset = 0x4, fixed_abs, tag = 'smem constant byte address 0x4 - core index']
  #allocation1 [shape = 'u32[144,128]{1,0:T(1,128)}', space=vmem, size = 0x12000, scoped, tag = 'internal scratch']
  %s0 = inlined_call_operand.vmem [shape: f32[2,784], index: 0, kind: input, shape index: {}]
  %s1 = inlined_call_operand.hbm [shape: bf16[784,384], index: 1, kind: input, shape index: {}]
  %s2 = inlined_call_operand.vmem [shape: f32[1,384], index: 2, kind: input, shape index: {}]
  %s3 = inlined_call_operand.vmem [shape: bf16[384,128], index: 3, kind: input, shape index: {}]
  %s4 = inlined_call_operand.vmem [shape: f32[1,128], index: 4, kind: input, shape index: {}]
  %s5 = inlined_call_operand.vmem [shape: bf16[2,128], index: 5, kind: output, shape index: {}]
  %s6 = sld [smem:[#allocation0]]
  $region64: #{lenet300_hidden_only.1} parent=0
    _
  %s8 = ssub.s32 1, %s6
  %s9 = scalar_select 0, %s8, %s6
  $region1: #{lenet300_hidden_only.1} parent=0
    #allocation2 [shape = 'u8[602112]{0}', space=vmem, size = 0x93000, scoped, tag = 'input window, operand 1, single buffered']
    #allocation3 [shape = 's32[1]{0}', space=sflag, size = 0x4, scoped, tag = 'scoped memory for lenet300_hidden_only.1']
    #allocation4 [shape = 'u8[4096]{0}', space=vmem, size = 0x1000, scoped, tag = 'output window, operand 0, single buffered']
    %10 = vsyncpa [#allocation3], 0
    // Predicated region
    $region2: #{lenet300_hidden_only.1} parent=1 // pred_check
      _
    $region3: #{lenet300_hidden_only.1} parent=1 // pred_check_branch
      %12 = sbr.rel (0) target = $region5
    $region4: #{lenet300_hidden_only.1} parent=1 // pred_region
      _
    $region5: #{lenet300_hidden_only.1} parent=1 // pred_fallthru
      _
    // Predicated region
    $region6: #{lenet300_hidden_only.1} parent=1 // pred_check
      _
    $region7: #{lenet300_hidden_only.1} parent=1 // pred_check_branch
      %14 = sbr.rel (0) target = $region9
    $region8: #{lenet300_hidden_only.1} parent=1 // pred_region
      %s16 = ssub.s32 18816, 18816
      %17 = vsyncadd [#allocation3], %s16
      %s18 = sshll.u32 [#allocation2], 4
      %s19 = int_to_ptr.vmem [resolvable:$true] %s18
      %24 = dma.hbm_to_vmem [thread:$0]  %s1, 18816, %s19, [#allocation3], 192, 192, 12
    $region9: #{lenet300_hidden_only.1} parent=1 // pred_fallthru
      _
    // Predicated region
    $region10: #{lenet300_hidden_only.1} parent=1 // pred_check
      _
    $region11: #{lenet300_hidden_only.1} parent=1 // pred_check_branch
      %26 = sbr.rel (0) target = $region13
    $region12: #{lenet300_hidden_only.1} parent=1 // pred_region
      _
    $region13: #{lenet300_hidden_only.1} parent=1 // pred_fallthru
      _
    // Predicated region
    $region14: #{lenet300_hidden_only.1} parent=1 // pred_check
      _
    $region15: #{lenet300_hidden_only.1} parent=1 // pred_check_branch
      %28 = sbr.rel (0) target = $region17
    $region16: #{lenet300_hidden_only.1} parent=1 // pred_region
      _
    $region17: #{lenet300_hidden_only.1} parent=1 // pred_fallthru
      _
    // Predicated region
    $region18: #{lenet300_hidden_only.1} parent=1 // pred_check
      _
    $region19: #{lenet300_hidden_only.1} parent=1 // pred_check_branch
      %30 = sbr.rel (0) target = $region21
    $region20: #{lenet300_hidden_only.1} parent=1 // pred_region
      _
    $region21: #{lenet300_hidden_only.1} parent=1 // pred_fallthru
      _
    // Predicated region
    $region22: #{lenet300_hidden_only.1} parent=1 // pred_check
      _
    $region23: #{lenet300_hidden_only.1} parent=1 // pred_check_branch
      %32 = sbr.rel (0) target = $region25
    $region24: #{lenet300_hidden_only.1} parent=1 // pred_region
      %33 = dma.done [#allocation3], 18816
    $region25: #{lenet300_hidden_only.1} parent=1 // pred_fallthru
      _
    %v35 = vld [vmem:[%s0] sm:$0xff]
    %v36 = vld [vmem:[%s0 + $0x8] sm:$0x3f]
    %v37 = vld [vmem:[%s0 + $0xe] sm:$0xff]
    %v38 = vld [vmem:[%s0 + $0x16] sm:$0x3f]
    %v39 = vld [vmem:[%s0 + $0x1c] sm:$0xff]
    %v40 = vld [vmem:[%s0 + $0x24] sm:$0x3f]
    %v41 = vld [vmem:[%s0 + $0x2a] sm:$0xff]
    %v42 = vld [vmem:[%s0 + $0x32] sm:$0x3f]
    %v43 = vld [vmem:[%s0 + $0x38] sm:$0xff]
    %v44 = vld [vmem:[%s0 + $0x40] sm:$0x3f]
    %v45 = vld [vmem:[%s0 + $0x46] sm:$0xff]
    %v46 = vld [vmem:[%s0 + $0x4e] sm:$0x3f]
    %v47 = vld [vmem:[%s0 + $0x54] sm:$0xff]
    %v48 = vld [vmem:[%s0 + $0x5c] sm:$0x3f]
    %v49 = vld [vmem:[%s0 + $0x62] sm:$0xff]
    %v50 = vld [vmem:[%s0 + $0x6a] sm:$0x3f]
    %v67 = vcombine.low %v35, %v37
    %v68 = vcombine.high %v35, %v37
    %v69 = vcombine.low %v39, %v41
    %v70 = vcombine.high %v39, %v41
    %v72 = vunpack.c.l.s4 1983009808
    %v73 = vunpack.c.0.s8 %v72
    %v74 = vlaneseq
    %v75 = vshrl.u32 %v74, 7
    %v76 = vsub.s32 %v73, %v75
    %v77 = vrot.slane %v67, %v76
    %v79 = vunpack.c.l.s4 1983009808
    %v80 = vunpack.c.0.s8 %v79
    %v81 = vlaneseq
    %v82 = vshrl.u32 %v81, 7
    %v83 = vsub.s32 %v80, %v82
    %v84 = vrot.slane %v68, %v83
    %v86 = vunpack.c.l.s4 1983009808
    %v87 = vunpack.c.0.s8 %v86
    %v88 = vlaneseq
    %v89 = vshrl.u32 %v88, 7
    %v90 = vsub.s32 %v87, %v89
    %v91 = vrot.slane %v69, %v90
    %v93 = vunpack.c.l.s4 1983009808
    %v94 = vunpack.c.0.s8 %v93
    %v95 = vlaneseq
    %v96 = vshrl.u32 %v95, 7
    %v97 = vsub.s32 %v94, %v96
    %v98 = vrot.slane %v70, %v97
    %v99 = vcombine.low %v77, %v91
    %v100 = vcombine.high %v77, %v91
    %v101 = vcombine.low %v84, %v98
    %v102 = vcombine.high %v84, %v98
    %v103 = vcombine.low %v36, %v38
    %v104 = vcombine.high %v36, %v38
    %v105 = vcombine.low %v40, %v42
    %v106 = vcombine.high %v40, %v42
    %v108 = vunpack.c.l.s4 1983009808
    %v109 = vunpack.c.0.s8 %v108
    %v110 = vlaneseq
    %v111 = vshrl.u32 %v110, 7
    %v112 = vsub.s32 %v109, %v111
    %v113 = vrot.slane %v103, %v112
    %v115 = vunpack.c.l.s4 1983009808
    %v116 = vunpack.c.0.s8 %v115
    %v117 = vlaneseq
    %v118 = vshrl.u32 %v117, 7
    %v119 = vsub.s32 %v116, %v118
    %v120 = vrot.slane %v104, %v119
    %v122 = vunpack.c.l.s4 1983009808
    %v123 = vunpack.c.0.s8 %v122
    %v124 = vlaneseq
    %v125 = vshrl.u32 %v124, 7
    %v126 = vsub.s32 %v123, %v125
    %v127 = vrot.slane %v105, %v126
    %v129 = vunpack.c.l.s4 1983009808
    %v130 = vunpack.c.0.s8 %v129
    %v131 = vlaneseq
    %v132 = vshrl.u32 %v131, 7
    %v133 = vsub.s32 %v130, %v132
    %v134 = vrot.slane %v106, %v133
    %v135 = vcombine.low %v113, %v127
    %v136 = vcombine.high %v113, %v127
    %v137 = vcombine.low %v120, %v134
    %v138 = vcombine.low %v43, %v45
    %v139 = vcombine.high %v43, %v45
    %v140 = vcombine.low %v47, %v49
    %v141 = vcombine.high %v47, %v49
    %v143 = vunpack.c.l.s4 1983009808
    %v144 = vunpack.c.0.s8 %v143
    %v145 = vlaneseq
    %v146 = vshrl.u32 %v145, 7
    %v147 = vsub.s32 %v144, %v146
    %v148 = vrot.slane %v138, %v147
    %v150 = vunpack.c.l.s4 1983009808
    %v151 = vunpack.c.0.s8 %v150
    %v152 = vlaneseq
    %v153 = vshrl.u32 %v152, 7
    %v154 = vsub.s32 %v151, %v153
    %v155 = vrot.slane %v139, %v154
    %v157 = vunpack.c.l.s4 1983009808
    %v158 = vunpack.c.0.s8 %v157
    %v159 = vlaneseq
    %v160 = vshrl.u32 %v159, 7
    %v161 = vsub.s32 %v158, %v160
    %v162 = vrot.slane %v140, %v161
    %v164 = vunpack.c.l.s4 1983009808
    %v165 = vunpack.c.0.s8 %v164
    %v166 = vlaneseq
    %v167 = vshrl.u32 %v166, 7
    %v168 = vsub.s32 %v165, %v167
    %v169 = vrot.slane %v141, %v168
    %v170 = vcombine.low %v148, %v162
    %v171 = vcombine.high %v148, %v162
    %v172 = vcombine.low %v155, %v169
    %v173 = vcombine.high %v155, %v169
    %v174 = vcombine.low %v44, %v46
    %v175 = vcombine.high %v44, %v46
    %v176 = vcombine.low %v48, %v50
    %v177 = vcombine.high %v48, %v50
    %v179 = vunpack.c.l.s4 1983009808
    %v180 = vunpack.c.0.s8 %v179
    %v181 = vlaneseq
    %v182 = vshrl.u32 %v181, 7
    %v183 = vsub.s32 %v180, %v182
    %v184 = vrot.slane %v174, %v183
    %v186 = vunpack.c.l.s4 1983009808
    %v187 = vunpack.c.0.s8 %v186
    %v188 = vlaneseq
    %v189 = vshrl.u32 %v188, 7
    %v190 = vsub.s32 %v187, %v189
    %v191 = vrot.slane %v175, %v190
    %v193 = vunpack.c.l.s4 1983009808
    %v194 = vunpack.c.0.s8 %v193
    %v195 = vlaneseq
    %v196 = vshrl.u32 %v195, 7
    %v197 = vsub.s32 %v194, %v196
    %v198 = vrot.slane %v176, %v197
    %v200 = vunpack.c.l.s4 1983009808
    %v201 = vunpack.c.0.s8 %v200
    %v202 = vlaneseq
    %v203 = vshrl.u32 %v202, 7
    %v204 = vsub.s32 %v201, %v203
    %v205 = vrot.slane %v177, %v204
    %v206 = vcombine.low %v184, %v198
    %v207 = vcombine.high %v184, %v198
    %v208 = vcombine.low %v191, %v205
    %v223 = vpack.c.bf16 %v170, %v99
    %v224 = vpack.c.bf16 %v171, %v100
    %v225 = vpack.c.bf16 %v172, %v101
    %v226 = vpack.c.bf16 %v173, %v102
    %v227 = vpack.c.bf16 %v206, %v135
    %v228 = vpack.c.bf16 %v207, %v136
    %v229 = vpack.c.bf16 %v208, %v137
    %v230 = vld [vmem:[#allocation2] sm:$0xff]
    %v231 = vld [vmem:[#allocation2 + $0x8] sm:$0xf]
    %v232 = vld [vmem:[#allocation2 + $0xc] sm:$0xff]
    %v233 = vld [vmem:[#allocation2 + $0x14] sm:$0xf]
    %v234 = vld [vmem:[#allocation2 + $0x18] sm:$0xff]
    %v235 = vld [vmem:[#allocation2 + $0x20] sm:$0xf]
    %v236 = vld [vmem:[#allocation2 + $0x24] sm:$0xff]
    %v237 = vld [vmem:[#allocation2 + $0x2c] sm:$0xf]
    %v238 = vld [vmem:[#allocation2 + $0x30] sm:$0xff]
    %v239 = vld [vmem:[#allocation2 + $0x38] sm:$0xf]
    %v240 = vld [vmem:[#allocation2 + $0x3c] sm:$0xff]
    %v241 = vld [vmem:[#allocation2 + $0x44] sm:$0xf]
    %v242 = vld [vmem:[#allocation2 + $0x48] sm:$0xff]
    %v243 = vld [vmem:[#allocation2 + $0x50] sm:$0xf]
    %v244 = vld [vmem:[#allocation2 + $0x54] sm:$0xff]
    %v245 = vld [vmem:[#allocation2 + $0x5c] sm:$0xf]
    %v246 = vld [vmem:[#allocation2 + $0x60] sm:$0xff]
    %v247 = vld [vmem:[#allocation2 + $0x68] sm:$0xf]
    %v248 = vld [vmem:[#allocation2 + $0x6c] sm:$0xff]
    %v249 = vld [vmem:[#allocation2 + $0x74] sm:$0xf]
    %v250 = vld [vmem:[#allocation2 + $0x78] sm:$0xff]
    %v251 = vld [vmem:[#allocation2 + $0x80] sm:$0xf]
    %v252 = vld [vmem:[#allocation2 + $0x84] sm:$0xff]
    %v253 = vld [vmem:[#allocation2 + $0x8c] sm:$0xf]
    %v254 = vld [vmem:[#allocation2 + $0x90] sm:$0xff]
    %v255 = vld [vmem:[#allocation2 + $0x98] sm:$0xf]
    %v256 = vld [vmem:[#allocation2 + $0x9c] sm:$0xff]
    %v257 = vld [vmem:[#allocation2 + $0xa4] sm:$0xf]
    %v258 = vld [vmem:[#allocation2 + $0xa8] sm:$0xff]
    %v259 = vld [vmem:[#allocation2 + $0xb0] sm:$0xf]
    %v260 = vld [vmem:[#allocation2 + $0xb4] sm:$0xff]
    %v261 = vld [vmem:[#allocation2 + $0xbc] sm:$0xf]
    %v262 = vld [vmem:[#allocation2 + $0xc0] sm:$0xff]
    %v263 = vld [vmem:[#allocation2 + $0xc8] sm:$0xf]
    %v264 = vld [vmem:[#allocation2 + $0xcc] sm:$0xff]
    %v265 = vld [vmem:[#allocation2 + $0xd4] sm:$0xf]
    %v266 = vld [vmem:[#allocation2 + $0xd8] sm:$0xff]
    %v267 = vld [vmem:[#allocation2 + $0xe0] sm:$0xf]
    %v268 = vld [vmem:[#allocation2 + $0xe4] sm:$0xff]
    %v269 = vld [vmem:[#allocation2 + $0xec] sm:$0xf]
    %v270 = vld [vmem:[#allocation2 + $0xf0] sm:$0xff]
    %v271 = vld [vmem:[#allocation2 + $0xf8] sm:$0xf]
    %v272 = vld [vmem:[#allocation2 + $0xfc] sm:$0xff]
    %v273 = vld [vmem:[#allocation2 + $0x104] sm:$0xf]
    %v274 = vld [vmem:[#allocation2 + $0x108] sm:$0xff]
    %v275 = vld [vmem:[#allocation2 + $0x110] sm:$0xf]
    %v276 = vld [vmem:[#allocation2 + $0x114] sm:$0xff]
    %v277 = vld [vmem:[#allocation2 + $0x11c] sm:$0xf]
    %v278 = vld [vmem:[#allocation2 + $0x120] sm:$0xff]
    %v279 = vld [vmem:[#allocation2 + $0x128] sm:$0xf]
    %v280 = vld [vmem:[#allocation2 + $0x12c] sm:$0xff]
    %v281 = vld [vmem:[#allocation2 + $0x134] sm:$0xf]
    %v282 = vld [vmem:[#allocation2 + $0x138] sm:$0xff]
    %v283 = vld [vmem:[#allocation2 + $0x140] sm:$0xf]
    %v284 = vld [vmem:[#allocation2 + $0x144] sm:$0xff]
    %v285 = vld [vmem:[#allocation2 + $0x14c] sm:$0xf]
    %v286 = vld [vmem:[#allocation2 + $0x150] sm:$0xff]
    %v287 = vld [vmem:[#allocation2 + $0x158] sm:$0xf]
    %v288 = vld [vmem:[#allocation2 + $0x15c] sm:$0xff]
    %v289 = vld [vmem:[#allocation2 + $0x164] sm:$0xf]
    %v290 = vld [vmem:[#allocation2 + $0x168] sm:$0xff]
    %v291 = vld [vmem:[#allocation2 + $0x170] sm:$0xf]
    %v292 = vld [vmem:[#allocation2 + $0x174] sm:$0xff]
    %v293 = vld [vmem:[#allocation2 + $0x17c] sm:$0xf]
    %v294 = vld [vmem:[#allocation2 + $0x180] sm:$0xff]
    %v295 = vld [vmem:[#allocation2 + $0x188] sm:$0xf]
    %v296 = vld [vmem:[#allocation2 + $0x18c] sm:$0xff]
    %v297 = vld [vmem:[#allocation2 + $0x194] sm:$0xf]
    %v298 = vld [vmem:[#allocation2 + $0x198] sm:$0xff]
    %v299 = vld [vmem:[#allocation2 + $0x1a0] sm:$0xf]
    %v300 = vld [vmem:[#allocation2 + $0x1a4] sm:$0xff]
    %v301 = vld [vmem:[#allocation2 + $0x1ac] sm:$0xf]
    %v302 = vld [vmem:[#allocation2 + $0x1b0] sm:$0xff]
    %v303 = vld [vmem:[#allocation2 + $0x1b8] sm:$0xf]
    %v304 = vld [vmem:[#allocation2 + $0x1bc] sm:$0xff]
    %v305 = vld [vmem:[#allocation2 + $0x1c4] sm:$0xf]
    %v306 = vld [vmem:[#allocation2 + $0x1c8] sm:$0xff]
    %v307 = vld [vmem:[#allocation2 + $0x1d0] sm:$0xf]
    %v308 = vld [vmem:[#allocation2 + $0x1d4] sm:$0xff]
    %v309 = vld [vmem:[#allocation2 + $0x1dc] sm:$0xf]
    %v310 = vld [vmem:[#allocation2 + $0x1e0] sm:$0xff]
    %v311 = vld [vmem:[#allocation2 + $0x1e8] sm:$0xf]
    %v312 = vld [vmem:[#allocation2 + $0x1ec] sm:$0xff]
    %v313 = vld [vmem:[#allocation2 + $0x1f4] sm:$0xf]
    %v314 = vld [vmem:[#allocation2 + $0x1f8] sm:$0xff]
    %v315 = vld [vmem:[#allocation2 + $0x200] sm:$0xf]
    %v316 = vld [vmem:[#allocation2 + $0x204] sm:$0xff]
    %v317 = vld [vmem:[#allocation2 + $0x20c] sm:$0xf]
    %v318 = vld [vmem:[#allocation2 + $0x210] sm:$0xff]
    %v319 = vld [vmem:[#allocation2 + $0x218] sm:$0xf]
    %v320 = vld [vmem:[#allocation2 + $0x21c] sm:$0xff]
    %v321 = vld [vmem:[#allocation2 + $0x224] sm:$0xf]
    %v322 = vld [vmem:[#allocation2 + $0x228] sm:$0xff]
    %v323 = vld [vmem:[#allocation2 + $0x230] sm:$0xf]
    %v324 = vld [vmem:[#allocation2 + $0x234] sm:$0xff]
    %v325 = vld [vmem:[#allocation2 + $0x23c] sm:$0xf]
    %v326 = vld [vmem:[#allocation2 + $0x240] sm:$0xff]
    %v327 = vld [vmem:[#allocation2 + $0x248] sm:$0xf]
    %v328 = vld [vmem:[#allocation2 + $0x24c] sm:$0xff]
    %v329 = vld [vmem:[#allocation2 + $0x254] sm:$0xf]
    %v330 = vld [vmem:[#allocation2 + $0x258] sm:$0xff]
    %v331 = vld [vmem:[#allocation2 + $0x260] sm:$0xf]
    %v332 = vld [vmem:[#allocation2 + $0x264] sm:$0xff]
    %v333 = vld [vmem:[#allocation2 + $0x26c] sm:$0xf]
    %v334 = vld [vmem:[#allocation2 + $0x270] sm:$0xff]
    %v335 = vld [vmem:[#allocation2 + $0x278] sm:$0xf]
    %v336 = vld [vmem:[#allocation2 + $0x27c] sm:$0xff]
    %v337 = vld [vmem:[#allocation2 + $0x284] sm:$0xf]
    %v338 = vld [vmem:[#allocation2 + $0x288] sm:$0xff]
    %v339 = vld [vmem:[#allocation2 + $0x290] sm:$0xf]
    %v340 = vld [vmem:[#allocation2 + $0x294] sm:$0xff]
    %v341 = vld [vmem:[#allocation2 + $0x29c] sm:$0xf]
    %v342 = vld [vmem:[#allocation2 + $0x2a0] sm:$0xff]
    %v343 = vld [vmem:[#allocation2 + $0x2a8] sm:$0xf]
    %v344 = vld [vmem:[#allocation2 + $0x2ac] sm:$0xff]
    %v345 = vld [vmem:[#allocation2 + $0x2b4] sm:$0xf]
    %v346 = vld [vmem:[#allocation2 + $0x2b8] sm:$0xff]
    %v347 = vld [vmem:[#allocation2 + $0x2c0] sm:$0xf]
    %v348 = vld [vmem:[#allocation2 + $0x2c4] sm:$0xff]
    %v349 = vld [vmem:[#allocation2 + $0x2cc] sm:$0xf]
    %v350 = vld [vmem:[#allocation2 + $0x2d0] sm:$0xff]
    %v351 = vld [vmem:[#allocation2 + $0x2d8] sm:$0xf]
    %v352 = vld [vmem:[#allocation2 + $0x2dc] sm:$0xff]
    %v353 = vld [vmem:[#allocation2 + $0x2e4] sm:$0xf]
    %v354 = vld [vmem:[#allocation2 + $0x2e8] sm:$0xff]
    %v355 = vld [vmem:[#allocation2 + $0x2f0] sm:$0xf]
    %v356 = vld [vmem:[#allocation2 + $0x2f4] sm:$0xff]
    %v357 = vld [vmem:[#allocation2 + $0x2fc] sm:$0xf]
    %v358 = vld [vmem:[#allocation2 + $0x300] sm:$0xff]
    %v359 = vld [vmem:[#allocation2 + $0x308] sm:$0xf]
    %v360 = vld [vmem:[#allocation2 + $0x30c] sm:$0xff]
    %v361 = vld [vmem:[#allocation2 + $0x314] sm:$0xf]
    %v362 = vld [vmem:[#allocation2 + $0x318] sm:$0xff]
    %v363 = vld [vmem:[#allocation2 + $0x320] sm:$0xf]
    %v364 = vld [vmem:[#allocation2 + $0x324] sm:$0xff]
    %v365 = vld [vmem:[#allocation2 + $0x32c] sm:$0xf]
    %v366 = vld [vmem:[#allocation2 + $0x330] sm:$0xff]
    %v367 = vld [vmem:[#allocation2 + $0x338] sm:$0xf]
    %v368 = vld [vmem:[#allocation2 + $0x33c] sm:$0xff]
    %v369 = vld [vmem:[#allocation2 + $0x344] sm:$0xf]
    %v370 = vld [vmem:[#allocation2 + $0x348] sm:$0xff]
    %v371 = vld [vmem:[#allocation2 + $0x350] sm:$0xf]
    %v372 = vld [vmem:[#allocation2 + $0x354] sm:$0xff]
    %v373 = vld [vmem:[#allocation2 + $0x35c] sm:$0xf]
    %v374 = vld [vmem:[#allocation2 + $0x360] sm:$0xff]
    %v375 = vld [vmem:[#allocation2 + $0x368] sm:$0xf]
    %v376 = vld [vmem:[#allocation2 + $0x36c] sm:$0xff]
    %v377 = vld [vmem:[#allocation2 + $0x374] sm:$0xf]
    %v378 = vld [vmem:[#allocation2 + $0x378] sm:$0xff]
    %v379 = vld [vmem:[#allocation2 + $0x380] sm:$0xf]
    %v380 = vld [vmem:[#allocation2 + $0x384] sm:$0xff]
    %v381 = vld [vmem:[#allocation2 + $0x38c] sm:$0xf]
    %v382 = vld [vmem:[#allocation2 + $0x390] sm:$0xff]
    %v383 = vld [vmem:[#allocation2 + $0x398] sm:$0xf]
    %v384 = vld [vmem:[#allocation2 + $0x39c] sm:$0xff]
    %v385 = vld [vmem:[#allocation2 + $0x3a4] sm:$0xf]
    %v386 = vld [vmem:[#allocation2 + $0x3a8] sm:$0xff]
    %v387 = vld [vmem:[#allocation2 + $0x3b0] sm:$0xf]
    %v388 = vld [vmem:[#allocation2 + $0x3b4] sm:$0xff]
    %v389 = vld [vmem:[#allocation2 + $0x3bc] sm:$0xf]
    %v390 = vld [vmem:[#allocation2 + $0x3c0] sm:$0xff]
    %v391 = vld [vmem:[#allocation2 + $0x3c8] sm:$0xf]
    %v392 = vld [vmem:[#allocation2 + $0x3cc] sm:$0xff]
    %v393 = vld [vmem:[#allocation2 + $0x3d4] sm:$0xf]
    %v394 = vld [vmem:[#allocation2 + $0x3d8] sm:$0xff]
    %v395 = vld [vmem:[#allocation2 + $0x3e0] sm:$0xf]
    %v396 = vld [vmem:[#allocation2 + $0x3e4] sm:$0xff]
    %v397 = vld [vmem:[#allocation2 + $0x3ec] sm:$0xf]
    %v398 = vld [vmem:[#allocation2 + $0x3f0] sm:$0xff]
    %v399 = vld [vmem:[#allocation2 + $0x3f8] sm:$0xf]
    %v400 = vld [vmem:[#allocation2 + $0x3fc] sm:$0xff]
    %v401 = vld [vmem:[#allocation2 + $0x404] sm:$0xf]
    %v402 = vld [vmem:[#allocation2 + $0x408] sm:$0xff]
    %v403 = vld [vmem:[#allocation2 + $0x410] sm:$0xf]
    %v404 = vld [vmem:[#allocation2 + $0x414] sm:$0xff]
    %v405 = vld [vmem:[#allocation2 + $0x41c] sm:$0xf]
    %v406 = vld [vmem:[#allocation2 + $0x420] sm:$0xff]
    %v407 = vld [vmem:[#allocation2 + $0x428] sm:$0xf]
    %v408 = vld [vmem:[#allocation2 + $0x42c] sm:$0xff]
    %v409 = vld [vmem:[#allocation2 + $0x434] sm:$0xf]
    %v410 = vld [vmem:[#allocation2 + $0x438] sm:$0xff]
    %v411 = vld [vmem:[#allocation2 + $0x440] sm:$0xf]
    %v412 = vld [vmem:[#allocation2 + $0x444] sm:$0xff]
    %v413 = vld [vmem:[#allocation2 + $0x44c] sm:$0xf]
    %v414 = vld [vmem:[#allocation2 + $0x450] sm:$0xff]
    %v415 = vld [vmem:[#allocation2 + $0x458] sm:$0xf]
    %v416 = vld [vmem:[#allocation2 + $0x45c] sm:$0xff]
    %v417 = vld [vmem:[#allocation2 + $0x464] sm:$0xf]
    %v418 = vld [vmem:[#allocation2 + $0x468] sm:$0xff]
    %v419 = vld [vmem:[#allocation2 + $0x470] sm:$0xf]
    %v420 = vld [vmem:[#allocation2 + $0x474] sm:$0xff]
    %v421 = vld [vmem:[#allocation2 + $0x47c] sm:$0xf]
    %v422 = vld [vmem:[#allocation2 + $0x480] sm:$0xff]
    %v423 = vld [vmem:[#allocation2 + $0x488] sm:$0xf]
    %v424 = vld [vmem:[#allocation2 + $0x48c] sm:$0xff]
    %v425 = vld [vmem:[#allocation2 + $0x494] sm:$0xf]
    %v426 = vld [vmem:[%s2] sm:$0x7]
    %v428 = vlaneseq
    %v429 = vshrl.u32 %v428, 7
    %v430 = vsub.s32 0, %v429
    %v431 = vrot.slane %v426, %v430
    %v432 = vlaneseq
    %v433 = vshrl.u32 %v432, 7
    %v434 = vsub.s32 1, %v433
    %v435 = vrot.slane %v426, %v434
    %v436 = vlaneseq
    %v437 = vshrl.u32 %v436, 7
    %v438 = vsub.s32 2, %v437
    %v439 = vrot.slane %v426, %v438
    %v639 = vunpack.c.l.b16 %v230
    %v640 = vunpack.c.h.b16 %v230
    %v641 = vunpack.c.l.b16 %v231
    %v642 = vunpack.c.l.b16 %v232
    %v643 = vunpack.c.h.b16 %v232
    %v644 = vunpack.c.l.b16 %v233
    %v645 = vunpack.c.l.b16 %v234
    %v646 = vunpack.c.h.b16 %v234
    %v647 = vunpack.c.l.b16 %v235
    %v648 = vunpack.c.l.b16 %v236
    %v649 = vunpack.c.h.b16 %v236
    %v650 = vunpack.c.l.b16 %v237
    %v651 = vunpack.c.l.b16 %v238
    %v652 = vunpack.c.h.b16 %v238
    %v653 = vunpack.c.l.b16 %v239
    %v654 = vunpack.c.l.b16 %v240
    %v655 = vunpack.c.h.b16 %v240
    %v656 = vunpack.c.l.b16 %v241
    %v657 = vunpack.c.l.b16 %v242
    %v658 = vunpack.c.h.b16 %v242
    %v659 = vunpack.c.l.b16 %v243
    %v660 = vunpack.c.l.b16 %v244
    %v661 = vunpack.c.h.b16 %v244
    %v662 = vunpack.c.l.b16 %v245
    %v663 = vunpack.c.l.b16 %v246
    %v664 = vunpack.c.h.b16 %v246
    %v665 = vunpack.c.l.b16 %v247
    %v666 = vunpack.c.l.b16 %v248
    %v667 = vunpack.c.h.b16 %v248
    %v668 = vunpack.c.l.b16 %v249
    %v669 = vunpack.c.l.b16 %v250
    %v670 = vunpack.c.h.b16 %v250
    %v671 = vunpack.c.l.b16 %v251
    %v672 = vunpack.c.l.b16 %v252
    %v673 = vunpack.c.h.b16 %v252
    %v674 = vunpack.c.l.b16 %v253
    %v675 = vunpack.c.l.b16 %v254
    %v676 = vunpack.c.h.b16 %v254
    %v677 = vunpack.c.l.b16 %v255
    %v678 = vunpack.c.l.b16 %v256
    %v679 = vunpack.c.h.b16 %v256
    %v680 = vunpack.c.l.b16 %v257
    %v681 = vunpack.c.l.b16 %v258
    %v682 = vunpack.c.h.b16 %v258
    %v683 = vunpack.c.l.b16 %v259
    %v684 = vunpack.c.l.b16 %v260
    %v685 = vunpack.c.h.b16 %v260
    %v686 = vunpack.c.l.b16 %v261
    %v687 = vunpack.c.l.b16 %v262
    %v688 = vunpack.c.h.b16 %v262
    %v689 = vunpack.c.l.b16 %v263
    %v690 = vunpack.c.l.b16 %v264
    %v691 = vunpack.c.h.b16 %v264
    %v692 = vunpack.c.l.b16 %v265
    %v693 = vunpack.c.l.b16 %v266
    %v694 = vunpack.c.h.b16 %v266
    %v695 = vunpack.c.l.b16 %v267
    %v696 = vunpack.c.l.b16 %v268
    %v697 = vunpack.c.h.b16 %v268
    %v698 = vunpack.c.l.b16 %v269
    %v699 = vunpack.c.l.b16 %v270
    %v700 = vunpack.c.h.b16 %v270
    %v701 = vunpack.c.l.b16 %v271
    %v702 = vunpack.c.l.b16 %v272
    %v703 = vunpack.c.h.b16 %v272
    %v704 = vunpack.c.l.b16 %v273
    %v705 = vunpack.c.l.b16 %v274
    %v706 = vunpack.c.h.b16 %v274
    %v707 = vunpack.c.l.b16 %v275
    %v708 = vunpack.c.l.b16 %v276
    %v709 = vunpack.c.h.b16 %v276
    %v710 = vunpack.c.l.b16 %v277
    %v711 = vunpack.c.l.b16 %v278
    %v712 = vunpack.c.h.b16 %v278
    %v713 = vunpack.c.l.b16 %v279
    %v714 = vunpack.c.l.b16 %v280
    %v715 = vunpack.c.h.b16 %v280
    %v716 = vunpack.c.l.b16 %v281
    %v717 = vunpack.c.l.b16 %v282
    %v718 = vunpack.c.h.b16 %v282
    %v719 = vunpack.c.l.b16 %v283
    %v720 = vunpack.c.l.b16 %v284
    %v721 = vunpack.c.h.b16 %v284
    %v722 = vunpack.c.l.b16 %v285
    %v723 = vunpack.c.l.b16 %v286
    %v724 = vunpack.c.h.b16 %v286
    %v725 = vunpack.c.l.b16 %v287
    %v726 = vunpack.c.l.b16 %v288
    %v727 = vunpack.c.h.b16 %v288
    %v728 = vunpack.c.l.b16 %v289
    %v729 = vunpack.c.l.b16 %v290
    %v730 = vunpack.c.h.b16 %v290
    %v731 = vunpack.c.l.b16 %v291
    %v732 = vunpack.c.l.b16 %v292
    %v733 = vunpack.c.h.b16 %v292
    %v734 = vunpack.c.l.b16 %v293
    %v735 = vunpack.c.l.b16 %v294
    %v736 = vunpack.c.h.b16 %v294
    %v737 = vunpack.c.l.b16 %v295
    %v738 = vunpack.c.l.b16 %v296
    %v739 = vunpack.c.h.b16 %v296
    %v740 = vunpack.c.l.b16 %v297
    %v741 = vunpack.c.l.b16 %v298
    %v742 = vunpack.c.h.b16 %v298
    %v743 = vunpack.c.l.b16 %v299
    %v744 = vunpack.c.l.b16 %v300
    %v745 = vunpack.c.h.b16 %v300
    %v746 = vunpack.c.l.b16 %v301
    %v747 = vunpack.c.l.b16 %v302
    %v748 = vunpack.c.h.b16 %v302
    %v749 = vunpack.c.l.b16 %v303
    %v750 = vunpack.c.l.b16 %v304
    %v751 = vunpack.c.h.b16 %v304
    %v752 = vunpack.c.l.b16 %v305
    %v753 = vunpack.c.l.b16 %v306
    %v754 = vunpack.c.h.b16 %v306
    %v755 = vunpack.c.l.b16 %v307
    %v756 = vunpack.c.l.b16 %v308
    %v757 = vunpack.c.h.b16 %v308
    %v758 = vunpack.c.l.b16 %v309
    %v759 = vunpack.c.l.b16 %v310
    %v760 = vunpack.c.h.b16 %v310
    %v761 = vunpack.c.l.b16 %v311
    %v762 = vunpack.c.l.b16 %v312
    %v763 = vunpack.c.h.b16 %v312
    %v764 = vunpack.c.l.b16 %v313
    %v765 = vunpack.c.l.b16 %v314
    %v766 = vunpack.c.h.b16 %v314
    %v767 = vunpack.c.l.b16 %v315
    %v768 = vunpack.c.l.b16 %v316
    %v769 = vunpack.c.h.b16 %v316
    %v770 = vunpack.c.l.b16 %v317
    %v771 = vunpack.c.l.b16 %v318
    %v772 = vunpack.c.h.b16 %v318
    %v773 = vunpack.c.l.b16 %v319
    %v774 = vunpack.c.l.b16 %v320
    %v775 = vunpack.c.h.b16 %v320
    %v776 = vunpack.c.l.b16 %v321
    %v777 = vunpack.c.l.b16 %v322
    %v778 = vunpack.c.h.b16 %v322
    %v779 = vunpack.c.l.b16 %v323
    %v780 = vunpack.c.l.b16 %v324
    %v781 = vunpack.c.h.b16 %v324
    %v782 = vunpack.c.l.b16 %v325
    %v783 = vunpack.c.l.b16 %v326
    %v784 = vunpack.c.h.b16 %v326
    %v785 = vunpack.c.l.b16 %v327
    %v786 = vunpack.c.l.b16 %v328
    %v787 = vunpack.c.h.b16 %v328
    %v788 = vunpack.c.l.b16 %v329
    %v789 = vunpack.c.l.b16 %v330
    %v790 = vunpack.c.h.b16 %v330
    %v791 = vunpack.c.l.b16 %v331
    %v792 = vunpack.c.l.b16 %v332
    %v793 = vunpack.c.h.b16 %v332
    %v794 = vunpack.c.l.b16 %v333
    %v795 = vunpack.c.l.b16 %v334
    %v796 = vunpack.c.h.b16 %v334
    %v797 = vunpack.c.l.b16 %v335
    %v798 = vunpack.c.l.b16 %v336
    %v799 = vunpack.c.h.b16 %v336
    %v800 = vunpack.c.l.b16 %v337
    %v801 = vunpack.c.l.b16 %v338
    %v802 = vunpack.c.h.b16 %v338
    %v803 = vunpack.c.l.b16 %v339
    %v804 = vunpack.c.l.b16 %v340
    %v805 = vunpack.c.h.b16 %v340
    %v806 = vunpack.c.l.b16 %v341
    %v807 = vunpack.c.l.b16 %v342
    %v808 = vunpack.c.h.b16 %v342
    %v809 = vunpack.c.l.b16 %v343
    %v810 = vunpack.c.l.b16 %v344
    %v811 = vunpack.c.h.b16 %v344
    %v812 = vunpack.c.l.b16 %v345
    %v813 = vunpack.c.l.b16 %v346
    %v814 = vunpack.c.h.b16 %v346
    %v815 = vunpack.c.l.b16 %v347
    %v816 = vunpack.c.l.b16 %v348
    %v817 = vunpack.c.h.b16 %v348
    %v818 = vunpack.c.l.b16 %v349
    %v819 = vunpack.c.l.b16 %v350
    %v820 = vunpack.c.h.b16 %v350
    %v821 = vunpack.c.l.b16 %v351
    %v822 = vunpack.c.l.b16 %v352
    %v823 = vunpack.c.h.b16 %v352
    %v824 = vunpack.c.l.b16 %v353
    %v825 = vunpack.c.l.b16 %v354
    %v826 = vunpack.c.h.b16 %v354
    %v827 = vunpack.c.l.b16 %v355
    %v828 = vunpack.c.l.b16 %v356
    %v829 = vunpack.c.h.b16 %v356
    %v830 = vunpack.c.l.b16 %v357
    %v831 = vunpack.c.l.b16 %v358
    %v832 = vunpack.c.h.b16 %v358
    %v833 = vunpack.c.l.b16 %v359
    %v834 = vunpack.c.l.b16 %v360
    %v835 = vunpack.c.h.b16 %v360
    %v836 = vunpack.c.l.b16 %v361
    %v837 = vunpack.c.l.b16 %v362
    %v838 = vunpack.c.h.b16 %v362
    %v839 = vunpack.c.l.b16 %v363
    %v840 = vunpack.c.l.b16 %v364
    %v841 = vunpack.c.h.b16 %v364
    %v842 = vunpack.c.l.b16 %v365
    %v843 = vunpack.c.l.b16 %v366
    %v844 = vunpack.c.h.b16 %v366
    %v845 = vunpack.c.l.b16 %v367
    %v846 = vunpack.c.l.b16 %v368
    %v847 = vunpack.c.h.b16 %v368
    %v848 = vunpack.c.l.b16 %v369
    %v849 = vunpack.c.l.b16 %v370
    %v850 = vunpack.c.h.b16 %v370
    %v851 = vunpack.c.l.b16 %v371
    %v852 = vunpack.c.l.b16 %v372
    %v853 = vunpack.c.h.b16 %v372
    %v854 = vunpack.c.l.b16 %v373
    %v855 = vunpack.c.l.b16 %v374
    %v856 = vunpack.c.h.b16 %v374
    %v857 = vunpack.c.l.b16 %v375
    %v858 = vunpack.c.l.b16 %v376
    %v859 = vunpack.c.h.b16 %v376
    %v860 = vunpack.c.l.b16 %v377
    %v861 = vunpack.c.l.b16 %v378
    %v862 = vunpack.c.h.b16 %v378
    %v863 = vunpack.c.l.b16 %v379
    %v864 = vunpack.c.l.b16 %v380
    %v865 = vunpack.c.h.b16 %v380
    %v866 = vunpack.c.l.b16 %v381
    %v867 = vunpack.c.l.b16 %v382
    %v868 = vunpack.c.h.b16 %v382
    %v869 = vunpack.c.l.b16 %v383
    %v870 = vunpack.c.l.b16 %v384
    %v871 = vunpack.c.h.b16 %v384
    %v872 = vunpack.c.l.b16 %v385
    %v873 = vunpack.c.l.b16 %v386
    %v874 = vunpack.c.h.b16 %v386
    %v875 = vunpack.c.l.b16 %v387
    %v876 = vunpack.c.l.b16 %v388
    %v877 = vunpack.c.h.b16 %v388
    %v878 = vunpack.c.l.b16 %v389
    %v879 = vunpack.c.l.b16 %v390
    %v880 = vunpack.c.h.b16 %v390
    %v881 = vunpack.c.l.b16 %v391
    %v882 = vunpack.c.l.b16 %v392
    %v883 = vunpack.c.h.b16 %v392
    %v884 = vunpack.c.l.b16 %v393
    %v885 = vunpack.c.l.b16 %v394
    %v886 = vunpack.c.h.b16 %v394
    %v887 = vunpack.c.l.b16 %v395
    %v888 = vunpack.c.l.b16 %v396
    %v889 = vunpack.c.h.b16 %v396
    %v890 = vunpack.c.l.b16 %v397
    %v891 = vunpack.c.l.b16 %v398
    %v892 = vunpack.c.h.b16 %v398
    %v893 = vunpack.c.l.b16 %v399
    %v894 = vunpack.c.l.b16 %v400
    %v895 = vunpack.c.h.b16 %v400
    %v896 = vunpack.c.l.b16 %v401
    %v897 = vunpack.c.l.b16 %v402
    %v898 = vunpack.c.h.b16 %v402
    %v899 = vunpack.c.l.b16 %v403
    %v900 = vunpack.c.l.b16 %v404
    %v901 = vunpack.c.h.b16 %v404
    %v902 = vunpack.c.l.b16 %v405
    %v903 = vunpack.c.l.b16 %v406
    %v904 = vunpack.c.h.b16 %v406
    %v905 = vunpack.c.l.b16 %v407
    %v906 = vunpack.c.l.b16 %v408
    %v907 = vunpack.c.h.b16 %v408
    %v908 = vunpack.c.l.b16 %v409
    %v909 = vunpack.c.l.b16 %v410
    %v910 = vunpack.c.h.b16 %v410
    %v911 = vunpack.c.l.b16 %v411
    %v912 = vunpack.c.l.b16 %v412
    %v913 = vunpack.c.h.b16 %v412
    %v914 = vunpack.c.l.b16 %v413
    %v915 = vunpack.c.l.b16 %v414
    %v916 = vunpack.c.h.b16 %v414
    %v917 = vunpack.c.l.b16 %v415
    %v918 = vunpack.c.l.b16 %v416
    %v919 = vunpack.c.h.b16 %v416
    %v920 = vunpack.c.l.b16 %v417
    %v921 = vunpack.c.l.b16 %v418
    %v922 = vunpack.c.h.b16 %v418
    %v923 = vunpack.c.l.b16 %v419
    %v924 = vunpack.c.l.b16 %v420
    %v925 = vunpack.c.h.b16 %v420
    %v926 = vunpack.c.l.b16 %v421
    %v927 = vunpack.c.l.b16 %v422
    %v928 = vunpack.c.h.b16 %v422
    %v929 = vunpack.c.l.b16 %v423
    %v930 = vunpack.c.l.b16 %v424
    %v931 = vunpack.c.h.b16 %v424
    %v932 = vunpack.c.l.b16 %v425
    %v933 = vpack.c.b16 %v642, %v639
    %v934 = vpack.c.b16 %v643, %v640
    %v935 = vpack.c.b16 %v644, %v641
    %v936 = vpack.c.b16 %v648, %v645
    %v937 = vpack.c.b16 %v649, %v646
    %v938 = vpack.c.b16 %v650, %v647
    %v939 = vpack.c.b16 %v654, %v651
    %v940 = vpack.c.b16 %v655, %v652
    %v941 = vpack.c.b16 %v656, %v653
    %v942 = vpack.c.b16 %v660, %v657
    %v943 = vpack.c.b16 %v661, %v658
    %v944 = vpack.c.b16 %v662, %v659
    %v945 = vpack.c.b16 %v666, %v663
    %v946 = vpack.c.b16 %v667, %v664
    %v947 = vpack.c.b16 %v668, %v665
    %v948 = vpack.c.b16 %v672, %v669
    %v949 = vpack.c.b16 %v673, %v670
    %v950 = vpack.c.b16 %v674, %v671
    %v951 = vpack.c.b16 %v678, %v675
    %v952 = vpack.c.b16 %v679, %v676
    %v953 = vpack.c.b16 %v680, %v677
    %v954 = vpack.c.b16 %v684, %v681
    %v955 = vpack.c.b16 %v685, %v682
    %v956 = vpack.c.b16 %v686, %v683
    %v957 = vpack.c.b16 %v690, %v687
    %v958 = vpack.c.b16 %v691, %v688
    %v959 = vpack.c.b16 %v692, %v689
    %v960 = vpack.c.b16 %v696, %v693
    %v961 = vpack.c.b16 %v697, %v694
    %v962 = vpack.c.b16 %v698, %v695
    %v963 = vpack.c.b16 %v702, %v699
    %v964 = vpack.c.b16 %v703, %v700
    %v965 = vpack.c.b16 %v704, %v701
    %v966 = vpack.c.b16 %v708, %v705
    %v967 = vpack.c.b16 %v709, %v706
    %v968 = vpack.c.b16 %v710, %v707
    %v969 = vpack.c.b16 %v714, %v711
    %v970 = vpack.c.b16 %v715, %v712
    %v971 = vpack.c.b16 %v716, %v713
    %v972 = vpack.c.b16 %v720, %v717
    %v973 = vpack.c.b16 %v721, %v718
    %v974 = vpack.c.b16 %v722, %v719
    %v975 = vpack.c.b16 %v726, %v723
    %v976 = vpack.c.b16 %v727, %v724
    %v977 = vpack.c.b16 %v728, %v725
    %v978 = vpack.c.b16 %v732, %v729
    %v979 = vpack.c.b16 %v733, %v730
    %v980 = vpack.c.b16 %v734, %v731
    %v981 = vpack.c.b16 %v738, %v735
    %v982 = vpack.c.b16 %v739, %v736
    %v983 = vpack.c.b16 %v740, %v737
    %v984 = vpack.c.b16 %v744, %v741
    %v985 = vpack.c.b16 %v745, %v742
    %v986 = vpack.c.b16 %v746, %v743
    %v987 = vpack.c.b16 %v750, %v747
    %v988 = vpack.c.b16 %v751, %v748
    %v989 = vpack.c.b16 %v752, %v749
    %v990 = vpack.c.b16 %v756, %v753
    %v991 = vpack.c.b16 %v757, %v754
    %v992 = vpack.c.b16 %v758, %v755
    %v993 = vpack.c.b16 %v762, %v759
    %v994 = vpack.c.b16 %v763, %v760
    %v995 = vpack.c.b16 %v764, %v761
    %v996 = vpack.c.b16 %v768, %v765
    %v997 = vpack.c.b16 %v769, %v766
    %v998 = vpack.c.b16 %v770, %v767
    %v999 = vpack.c.b16 %v774, %v771
    %v1000 = vpack.c.b16 %v775, %v772
    %v1001 = vpack.c.b16 %v776, %v773
    %v1002 = vpack.c.b16 %v780, %v777
    %v1003 = vpack.c.b16 %v781, %v778
    %v1004 = vpack.c.b16 %v782, %v779
    %v1005 = vpack.c.b16 %v786, %v783
    %v1006 = vpack.c.b16 %v787, %v784
    %v1007 = vpack.c.b16 %v788, %v785
    %v1008 = vpack.c.b16 %v792, %v789
    %v1009 = vpack.c.b16 %v793, %v790
    %v1010 = vpack.c.b16 %v794, %v791
    %v1011 = vpack.c.b16 %v798, %v795
    %v1012 = vpack.c.b16 %v799, %v796
    %v1013 = vpack.c.b16 %v800, %v797
    %v1014 = vpack.c.b16 %v804, %v801
    %v1015 = vpack.c.b16 %v805, %v802
    %v1016 = vpack.c.b16 %v806, %v803
    %v1017 = vpack.c.b16 %v810, %v807
    %v1018 = vpack.c.b16 %v811, %v808
    %v1019 = vpack.c.b16 %v812, %v809
    %v1020 = vpack.c.b16 %v816, %v813
    %v1021 = vpack.c.b16 %v817, %v814
    %v1022 = vpack.c.b16 %v818, %v815
    %v1023 = vpack.c.b16 %v822, %v819
    %v1024 = vpack.c.b16 %v823, %v820
    %v1025 = vpack.c.b16 %v824, %v821
    %v1026 = vpack.c.b16 %v828, %v825
    %v1027 = vpack.c.b16 %v829, %v826
    %v1028 = vpack.c.b16 %v830, %v827
    %v1029 = vpack.c.b16 %v834, %v831
    %v1030 = vpack.c.b16 %v835, %v832
    %v1031 = vpack.c.b16 %v836, %v833
    %v1032 = vpack.c.b16 %v840, %v837
    %v1033 = vpack.c.b16 %v841, %v838
    %v1034 = vpack.c.b16 %v842, %v839
    %v1035 = vpack.c.b16 %v846, %v843
    %v1036 = vpack.c.b16 %v847, %v844
    %v1037 = vpack.c.b16 %v848, %v845
    %v1038 = vpack.c.b16 %v852, %v849
    %v1039 = vpack.c.b16 %v853, %v850
    %v1040 = vpack.c.b16 %v854, %v851
    %v1041 = vpack.c.b16 %v858, %v855
    %v1042 = vpack.c.b16 %v859, %v856
    %v1043 = vpack.c.b16 %v860, %v857
    %v1044 = vpack.c.b16 %v864, %v861
    %v1045 = vpack.c.b16 %v865, %v862
    %v1046 = vpack.c.b16 %v866, %v863
    %v1047 = vpack.c.b16 %v870, %v867
    %v1048 = vpack.c.b16 %v871, %v868
    %v1049 = vpack.c.b16 %v872, %v869
    %v1050 = vpack.c.b16 %v876, %v873
    %v1051 = vpack.c.b16 %v877, %v874
    %v1052 = vpack.c.b16 %v878, %v875
    %v1053 = vpack.c.b16 %v882, %v879
    %v1054 = vpack.c.b16 %v883, %v880
    %v1055 = vpack.c.b16 %v884, %v881
    %v1056 = vpack.c.b16 %v888, %v885
    %v1057 = vpack.c.b16 %v889, %v886
    %v1058 = vpack.c.b16 %v890, %v887
    %v1059 = vpack.c.b16 %v894, %v891
    %v1060 = vpack.c.b16 %v895, %v892
    %v1061 = vpack.c.b16 %v896, %v893
    %v1062 = vpack.c.b16 %v900, %v897
    %v1063 = vpack.c.b16 %v901, %v898
    %v1064 = vpack.c.b16 %v902, %v899
    %v1065 = vpack.c.b16 %v906, %v903
    %v1066 = vpack.c.b16 %v907, %v904
    %v1067 = vpack.c.b16 %v908, %v905
    %v1068 = vpack.c.b16 %v912, %v909
    %v1069 = vpack.c.b16 %v913, %v910
    %v1070 = vpack.c.b16 %v914, %v911
    %v1071 = vpack.c.b16 %v918, %v915
    %v1072 = vpack.c.b16 %v919, %v916
    %v1073 = vpack.c.b16 %v920, %v917
    %v1074 = vpack.c.b16 %v924, %v921
    %v1075 = vpack.c.b16 %v925, %v922
    %v1076 = vpack.c.b16 %v926, %v923
    %v1077 = vpack.c.b16 %v930, %v927
    %v1078 = vpack.c.b16 %v931, %v928
    %v1079 = vpack.c.b16 %v932, %v929
    %vm1227 = vcmask 130048
    %v1229 = vsel %vm1227, %v229, 0
    %1231 = vmatprep.subr.bf16.mxu0 %v934
    %1232 = vmatpush1.bf16.msra.mxu0 %v933
    %1233 = vmatprep.subr.bf16.mxu0 %v937
    %1234 = vmatpush1.bf16.msra.mxu0 %v936
    %1235 = vmatprep.subr.bf16.mxu0 %v940
    %1236 = vmatpush1.bf16.msra.mxu0 %v939
    %1237 = vmatprep.subr.bf16.mxu0 %v943
    %1238 = vmatpush1.bf16.msra.mxu0 %v942
    %1239 = vmatprep.subr.bf16.mxu0 %v946
    %1240 = vmatpush1.bf16.msra.mxu0 %v945
    %1241 = vmatprep.subr.bf16.mxu0 %v949
    %1242 = vmatpush1.bf16.msra.mxu0 %v948
    %1243 = vmatprep.subr.bf16.mxu0 %v952
    %1244 = vmatpush1.bf16.msra.mxu0 %v951
    %1245 = vmatprep.subr.bf16.mxu0 %v955
    %1246 = vmatpush1.bf16.msra.mxu0 %v954
    %1247 = vmatprep.subr.bf16.mxu0 %v958
    %1248 = vmatpush1.bf16.msra.mxu0 %v957
    %1249 = vmatprep.subr.bf16.mxu0 %v961
    %1250 = vmatpush1.bf16.msra.mxu0 %v960
    %1251 = vmatprep.subr.bf16.mxu0 %v964
    %1252 = vmatpush1.bf16.msra.mxu0 %v963
    %1253 = vmatprep.subr.bf16.mxu0 %v967
    %1254 = vmatpush1.bf16.msra.mxu0 %v966
    %1255 = vmatprep.subr.bf16.mxu0 %v970
    %1256 = vmatpush1.bf16.msra.mxu0 %v969
    %1257 = vmatprep.subr.bf16.mxu0 %v973
    %1258 = vmatpush1.bf16.msra.mxu0 %v972
    %1259 = vmatprep.subr.bf16.mxu0 %v976
    %1260 = vmatpush1.bf16.msra.mxu0 %v975
    %1261 = vmatprep.subr.bf16.mxu0 %v979
    %1262 = vmatpush1.bf16.msra.mxu0 %v978
    %1263 = vmatprep.mubr.bf16.mxu0 %v224
    %1264 = vmatmul.mubr.bf16.gmra.mrb[0].mxu0 %v223
    %v1265 = vpop.f32.mrb[0].mxu0
    %v1266 = vadd.f32 %v431, %v1265
    %v1267 = vpop.f32.mrb[0].mxu0
    %v1268 = vadd.f32 %v435, %v1267
    %v1269 = vpop.f32.mrb[0].mxu0
    %v1270 = vadd.f32 %v431, %v1269
    %v1271 = vpop.f32.mrb[0].mxu0
    %v1272 = vadd.f32 %v435, %v1271
    %1273 = vdwg.mxu0
    %1274 = vmatprep.subr.bf16.mxu0 %v982
    %1275 = vmatpush1.bf16.msra.mxu0 %v981
    %1276 = vmatprep.subr.bf16.mxu0 %v985
    %1277 = vmatpush1.bf16.msra.mxu0 %v984
    %1278 = vmatprep.subr.bf16.mxu0 %v988
    %1279 = vmatpush1.bf16.msra.mxu0 %v987
    %1280 = vmatprep.subr.bf16.mxu0 %v991
    %1281 = vmatpush1.bf16.msra.mxu0 %v990
    %1282 = vmatprep.subr.bf16.mxu0 %v994
    %1283 = vmatpush1.bf16.msra.mxu0 %v993
    %1284 = vmatprep.subr.bf16.mxu0 %v997
    %1285 = vmatpush1.bf16.msra.mxu0 %v996
    %1286 = vmatprep.subr.bf16.mxu0 %v1000
    %1287 = vmatpush1.bf16.msra.mxu0 %v999
    %1288 = vmatprep.subr.bf16.mxu0 %v1003
    %1289 = vmatpush1.bf16.msra.mxu0 %v1002
    %1290 = vmatprep.subr.bf16.mxu0 %v1006
    %1291 = vmatpush1.bf16.msra.mxu0 %v1005
    %1292 = vmatprep.subr.bf16.mxu0 %v1009
    %1293 = vmatpush1.bf16.msra.mxu0 %v1008
    %1294 = vmatprep.subr.bf16.mxu0 %v1012
    %1295 = vmatpush1.bf16.msra.mxu0 %v1011
    %1296 = vmatprep.subr.bf16.mxu0 %v1015
    %1297 = vmatpush1.bf16.msra.mxu0 %v1014
    %1298 = vmatprep.subr.bf16.mxu0 %v1018
    %1299 = vmatpush1.bf16.msra.mxu0 %v1017
    %1300 = vmatprep.subr.bf16.mxu0 %v1021
    %1301 = vmatpush1.bf16.msra.mxu0 %v1020
    %1302 = vmatprep.subr.bf16.mxu0 %v1024
    %1303 = vmatpush1.bf16.msra.mxu0 %v1023
    %1304 = vmatprep.subr.bf16.mxu0 %v1027
    %1305 = vmatpush1.bf16.msra.mxu0 %v1026
    %1306 = vmatprep.mubr.bf16.mxu0 %v226
    %1307 = vmatmul.mubr.bf16.gmra.mrb[0].mxu0 %v225
    %v1308 = vpop.f32.mrb[0].mxu0
    %v1309 = vadd.f32 %v1266, %v1308
    %v1310 = vpop.f32.mrb[0].mxu0
    %v1311 = vadd.f32 %v1268, %v1310
    %v1312 = vpop.f32.mrb[0].mxu0
    %v1313 = vadd.f32 %v1270, %v1312
    %v1314 = vpop.f32.mrb[0].mxu0
    %v1315 = vadd.f32 %v1272, %v1314
    %1316 = vdwg.mxu0
    %1317 = vmatprep.subr.bf16.mxu0 %v1030
    %1318 = vmatpush1.bf16.msra.mxu0 %v1029
    %1319 = vmatprep.subr.bf16.mxu0 %v1033
    %1320 = vmatpush1.bf16.msra.mxu0 %v1032
    %1321 = vmatprep.subr.bf16.mxu0 %v1036
    %1322 = vmatpush1.bf16.msra.mxu0 %v1035
    %1323 = vmatprep.subr.bf16.mxu0 %v1039
    %1324 = vmatpush1.bf16.msra.mxu0 %v1038
    %1325 = vmatprep.subr.bf16.mxu0 %v1042
    %1326 = vmatpush1.bf16.msra.mxu0 %v1041
    %1327 = vmatprep.subr.bf16.mxu0 %v1045
    %1328 = vmatpush1.bf16.msra.mxu0 %v1044
    %1329 = vmatprep.subr.bf16.mxu0 %v1048
    %1330 = vmatpush1.bf16.msra.mxu0 %v1047
    %1331 = vmatprep.subr.bf16.mxu0 %v1051
    %1332 = vmatpush1.bf16.msra.mxu0 %v1050
    %1333 = vmatprep.subr.bf16.mxu0 %v1054
    %1334 = vmatpush1.bf16.msra.mxu0 %v1053
    %1335 = vmatprep.subr.bf16.mxu0 %v1057
    %1336 = vmatpush1.bf16.msra.mxu0 %v1056
    %1337 = vmatprep.subr.bf16.mxu0 %v1060
    %1338 = vmatpush1.bf16.msra.mxu0 %v1059
    %1339 = vmatprep.subr.bf16.mxu0 %v1063
    %1340 = vmatpush1.bf16.msra.mxu0 %v1062
    %1341 = vmatprep.subr.bf16.mxu0 %v1066
    %1342 = vmatpush1.bf16.msra.mxu0 %v1065
    %1343 = vmatprep.subr.bf16.mxu0 %v1069
    %1344 = vmatpush1.bf16.msra.mxu0 %v1068
    %1345 = vmatprep.subr.bf16.mxu0 %v1072
    %1346 = vmatpush1.bf16.msra.mxu0 %v1071
    %1347 = vmatprep.subr.bf16.mxu0 %v1075
    %1348 = vmatpush1.bf16.msra.mxu0 %v1074
    %1349 = vmatprep.mubr.bf16.mxu0 %v228
    %1350 = vmatmul.mubr.bf16.gmra.mrb[0].mxu0 %v227
    %v1351 = vpop.f32.mrb[0].mxu0
    %v1352 = vadd.f32 %v1309, %v1351
    %v1353 = vpop.f32.mrb[0].mxu0
    %v1354 = vadd.f32 %v1311, %v1353
    %v1355 = vpop.f32.mrb[0].mxu0
    %v1356 = vadd.f32 %v1313, %v1355
    %v1357 = vpop.f32.mrb[0].mxu0
    %v1358 = vadd.f32 %v1315, %v1357
    %1359 = vdwg.mxu0
    %1360 = vmatprep.subr.bf16.mxu0 %v1078
    %1361 = vmatpush1.bf16.msra.mxu0 %v1077
    %1362 = vmatprep.subr.bf16.mxu0 0
    %1363 = vmatpush1.bf16.msra.mxu0 0
    %1364 = vmatprep.subr.bf16.mxu0 0
    %1365 = vmatpush1.bf16.msra.mxu0 0
    %1366 = vmatprep.subr.bf16.mxu0 0
    %1367 = vmatpush1.bf16.msra.mxu0 0
    %1368 = vmatprep.subr.bf16.mxu0 0
    %1369 = vmatpush1.bf16.msra.mxu0 0
    %1370 = vmatprep.subr.bf16.mxu0 0
    %1371 = vmatpush1.bf16.msra.mxu0 0
    %1372 = vmatprep.subr.bf16.mxu0 0
    %1373 = vmatpush1.bf16.msra.mxu0 0
    %1374 = vmatprep.subr.bf16.mxu0 0
    %1375 = vmatpush1.bf16.msra.mxu0 0
    %1376 = vmatprep.subr.bf16.mxu0 0
    %1377 = vmatpush1.bf16.msra.mxu0 0
    %1378 = vmatprep.subr.bf16.mxu0 0
    %1379 = vmatpush1.bf16.msra.mxu0 0
    %1380 = vmatprep.subr.bf16.mxu0 0
    %1381 = vmatpush1.bf16.msra.mxu0 0
    %1382 = vmatprep.subr.bf16.mxu0 0
    %1383 = vmatpush1.bf16.msra.mxu0 0
    %1384 = vmatprep.subr.bf16.mxu0 0
    %1385 = vmatpush1.bf16.msra.mxu0 0
    %1386 = vmatprep.subr.bf16.mxu0 0
    %1387 = vmatpush1.bf16.msra.mxu0 0
    %1388 = vmatprep.subr.bf16.mxu0 0
    %1389 = vmatpush1.bf16.msra.mxu0 0
    %1390 = vmatprep.subr.bf16.mxu0 0
    %1391 = vmatpush1.bf16.msra.mxu0 0
    %1392 = vmatprep.mubr.bf16.mxu0 0
    %1393 = vmatmul.mubr.bf16.gmra.mrb[0].mxu0 %v1229
    %v1394 = vpop.f32.mrb[0].mxu0
    %v1395 = vadd.f32 %v1352, %v1394
    %v1396 = vpop.f32.mrb[0].mxu0
    %v1397 = vadd.f32 %v1354, %v1396
    %v1398 = vpop.f32.mrb[0].mxu0
    %v1399 = vadd.f32 %v1356, %v1398
    %v1400 = vpop.f32.mrb[0].mxu0
    %v1401 = vadd.f32 %v1358, %v1400
    %1402 = vdwg.mxu0
    %1403 = vmatprep.subr.bf16.mxu0 0
    %1404 = vmatpush1.bf16.msra.mxu0 %v935
    %1405 = vmatprep.subr.bf16.mxu0 0
    %1406 = vmatpush1.bf16.msra.mxu0 %v938
    %1407 = vmatprep.subr.bf16.mxu0 0
    %1408 = vmatpush1.bf16.msra.mxu0 %v941
    %1409 = vmatprep.subr.bf16.mxu0 0
    %1410 = vmatpush1.bf16.msra.mxu0 %v944
    %1411 = vmatprep.subr.bf16.mxu0 0
    %1412 = vmatpush1.bf16.msra.mxu0 %v947
    %1413 = vmatprep.subr.bf16.mxu0 0
    %1414 = vmatpush1.bf16.msra.mxu0 %v950
    %1415 = vmatprep.subr.bf16.mxu0 0
    %1416 = vmatpush1.bf16.msra.mxu0 %v953
    %1417 = vmatprep.subr.bf16.mxu0 0
    %1418 = vmatpush1.bf16.msra.mxu0 %v956
    %1419 = vmatprep.subr.bf16.mxu0 0
    %1420 = vmatpush1.bf16.msra.mxu0 %v959
    %1421 = vmatprep.subr.bf16.mxu0 0
    %1422 = vmatpush1.bf16.msra.mxu0 %v962
    %1423 = vmatprep.subr.bf16.mxu0 0
    %1424 = vmatpush1.bf16.msra.mxu0 %v965
    %1425 = vmatprep.subr.bf16.mxu0 0
    %1426 = vmatpush1.bf16.msra.mxu0 %v968
    %1427 = vmatprep.subr.bf16.mxu0 0
    %1428 = vmatpush1.bf16.msra.mxu0 %v971
    %1429 = vmatprep.subr.bf16.mxu0 0
    %1430 = vmatpush1.bf16.msra.mxu0 %v974
    %1431 = vmatprep.subr.bf16.mxu0 0
    %1432 = vmatpush1.bf16.msra.mxu0 %v977
    %1433 = vmatprep.subr.bf16.mxu0 0
    %1434 = vmatpush1.bf16.msra.mxu0 %v980
    %1435 = vmatprep.mubr.bf16.mxu0 %v224
    %1436 = vmatmul.mubr.bf16.gmra.mrb[0].mxu0 %v223
    %v1437 = vpop.f32.mrb[0].mxu0
    %v1438 = vadd.f32 %v439, %v1437
    %v1439 = vpop.f32.mrb[0].mxu0
    %v1440 = vpop.f32.mrb[0].mxu0
    %v1441 = vadd.f32 %v439, %v1440
    %v1442 = vpop.f32.mrb[0].mxu0
    %1443 = vdwg.mxu0
    %1444 = vmatprep.subr.bf16.mxu0 0
    %1445 = vmatpush1.bf16.msra.mxu0 %v983
    %1446 = vmatprep.subr.bf16.mxu0 0
    %1447 = vmatpush1.bf16.msra.mxu0 %v986
    %1448 = vmatprep.subr.bf16.mxu0 0
    %1449 = vmatpush1.bf16.msra.mxu0 %v989
    %1450 = vmatprep.subr.bf16.mxu0 0
    %1451 = vmatpush1.bf16.msra.mxu0 %v992
    %1452 = vmatprep.subr.bf16.mxu0 0
    %1453 = vmatpush1.bf16.msra.mxu0 %v995
    %1454 = vmatprep.subr.bf16.mxu0 0
    %1455 = vmatpush1.bf16.msra.mxu0 %v998
    %1456 = vmatprep.subr.bf16.mxu0 0
    %1457 = vmatpush1.bf16.msra.mxu0 %v1001
    %1458 = vmatprep.subr.bf16.mxu0 0
    %1459 = vmatpush1.bf16.msra.mxu0 %v1004
    %1460 = vmatprep.subr.bf16.mxu0 0
    %1461 = vmatpush1.bf16.msra.mxu0 %v1007
    %1462 = vmatprep.subr.bf16.mxu0 0
    %1463 = vmatpush1.bf16.msra.mxu0 %v1010
    %1464 = vmatprep.subr.bf16.mxu0 0
    %1465 = vmatpush1.bf16.msra.mxu0 %v1013
    %1466 = vmatprep.subr.bf16.mxu0 0
    %1467 = vmatpush1.bf16.msra.mxu0 %v1016
    %1468 = vmatprep.subr.bf16.mxu0 0
    %1469 = vmatpush1.bf16.msra.mxu0 %v1019
    %1470 = vmatprep.subr.bf16.mxu0 0
    %1471 = vmatpush1.bf16.msra.mxu0 %v1022
    %1472 = vmatprep.subr.bf16.mxu0 0
    %1473 = vmatpush1.bf16.msra.mxu0 %v1025
    %1474 = vmatprep.subr.bf16.mxu0 0
    %1475 = vmatpush1.bf16.msra.mxu0 %v1028
    %1476 = vmatprep.mubr.bf16.mxu0 %v226
    %1477 = vmatmul.mubr.bf16.gmra.mrb[0].mxu0 %v225
    %v1478 = vpop.f32.mrb[0].mxu0
    %v1479 = vadd.f32 %v1438, %v1478
    %v1480 = vpop.f32.mrb[0].mxu0
    %v1481 = vpop.f32.mrb[0].mxu0
    %v1482 = vadd.f32 %v1441, %v1481
    %v1483 = vpop.f32.mrb[0].mxu0
    %1484 = vdwg.mxu0
    %1485 = vmatprep.subr.bf16.mxu0 0
    %1486 = vmatpush1.bf16.msra.mxu0 %v1031
    %1487 = vmatprep.subr.bf16.mxu0 0
    %1488 = vmatpush1.bf16.msra.mxu0 %v1034
    %1489 = vmatprep.subr.bf16.mxu0 0
    %1490 = vmatpush1.bf16.msra.mxu0 %v1037
    %1491 = vmatprep.subr.bf16.mxu0 0
    %1492 = vmatpush1.bf16.msra.mxu0 %v1040
    %1493 = vmatprep.subr.bf16.mxu0 0
    %1494 = vmatpush1.bf16.msra.mxu0 %v1043
    %1495 = vmatprep.subr.bf16.mxu0 0
    %1496 = vmatpush1.bf16.msra.mxu0 %v1046
    %1497 = vmatprep.subr.bf16.mxu0 0
    %1498 = vmatpush1.bf16.msra.mxu0 %v1049
    %1499 = vmatprep.subr.bf16.mxu0 0
    %1500 = vmatpush1.bf16.msra.mxu0 %v1052
    %1501 = vmatprep.subr.bf16.mxu0 0
    %1502 = vmatpush1.bf16.msra.mxu0 %v1055
    %1503 = vmatprep.subr.bf16.mxu0 0
    %1504 = vmatpush1.bf16.msra.mxu0 %v1058
    %1505 = vmatprep.subr.bf16.mxu0 0
    %1506 = vmatpush1.bf16.msra.mxu0 %v1061
    %1507 = vmatprep.subr.bf16.mxu0 0
    %1508 = vmatpush1.bf16.msra.mxu0 %v1064
    %1509 = vmatprep.subr.bf16.mxu0 0
    %1510 = vmatpush1.bf16.msra.mxu0 %v1067
    %1511 = vmatprep.subr.bf16.mxu0 0
    %1512 = vmatpush1.bf16.msra.mxu0 %v1070
    %1513 = vmatprep.subr.bf16.mxu0 0
    %1514 = vmatpush1.bf16.msra.mxu0 %v1073
    %1515 = vmatprep.subr.bf16.mxu0 0
    %1516 = vmatpush1.bf16.msra.mxu0 %v1076
    %1517 = vmatprep.mubr.bf16.mxu0 %v228
    %1518 = vmatmul.mubr.bf16.gmra.mrb[0].mxu0 %v227
    %v1519 = vpop.f32.mrb[0].mxu0
    %v1520 = vadd.f32 %v1479, %v1519
    %v1521 = vpop.f32.mrb[0].mxu0
    %v1522 = vpop.f32.mrb[0].mxu0
    %v1523 = vadd.f32 %v1482, %v1522
    %v1524 = vpop.f32.mrb[0].mxu0
    %1525 = vdwg.mxu0
    %1526 = vmatprep.subr.bf16.mxu0 0
    %1527 = vmatpush1.bf16.msra.mxu0 %v1079
    %1528 = vmatprep.subr.bf16.mxu0 0
    %1529 = vmatpush1.bf16.msra.mxu0 0
    %1530 = vmatprep.subr.bf16.mxu0 0
    %1531 = vmatpush1.bf16.msra.mxu0 0
    %1532 = vmatprep.subr.bf16.mxu0 0
    %1533 = vmatpush1.bf16.msra.mxu0 0
    %1534 = vmatprep.subr.bf16.mxu0 0
    %1535 = vmatpush1.bf16.msra.mxu0 0
    %1536 = vmatprep.subr.bf16.mxu0 0
    %1537 = vmatpush1.bf16.msra.mxu0 0
    %1538 = vmatprep.subr.bf16.mxu0 0
    %1539 = vmatpush1.bf16.msra.mxu0 0
    %1540 = vmatprep.subr.bf16.mxu0 0
    %1541 = vmatpush1.bf16.msra.mxu0 0
    %1542 = vmatprep.subr.bf16.mxu0 0
    %1543 = vmatpush1.bf16.msra.mxu0 0
    %1544 = vmatprep.subr.bf16.mxu0 0
    %1545 = vmatpush1.bf16.msra.mxu0 0
    %1546 = vmatprep.subr.bf16.mxu0 0
    %1547 = vmatpush1.bf16.msra.mxu0 0
    %1548 = vmatprep.subr.bf16.mxu0 0
    %1549 = vmatpush1.bf16.msra.mxu0 0
    %1550 = vmatprep.subr.bf16.mxu0 0
    %1551 = vmatpush1.bf16.msra.mxu0 0
    %1552 = vmatprep.subr.bf16.mxu0 0
    %1553 = vmatpush1.bf16.msra.mxu0 0
    %1554 = vmatprep.subr.bf16.mxu0 0
    %1555 = vmatpush1.bf16.msra.mxu0 0
    %1556 = vmatprep.subr.bf16.mxu0 0
    %1557 = vmatpush1.bf16.msra.mxu0 0
    %1558 = vmatprep.mubr.bf16.mxu0 0
    %1559 = vmatmul.mubr.bf16.gmra.mrb[0].mxu0 %v1229
    %v1560 = vpop.f32.mrb[0].mxu0
    %v1561 = vadd.f32 %v1520, %v1560
    %v1562 = vpop.f32.mrb[0].mxu0
    %v1563 = vpop.f32.mrb[0].mxu0
    %v1564 = vadd.f32 %v1523, %v1563
    %v1565 = vpop.f32.mrb[0].mxu0
    %1566 = vdwg.mxu0
    %v1567 = vmax.f32 %v1395, 0.0
    %v1568 = vmax.f32 %v1397, 0.0
    %v1569 = vmax.f32 %v1561, 0.0
    %v1570 = vmax.f32 %v1399, 0.0
    %v1571 = vmax.f32 %v1401, 0.0
    %v1572 = vmax.f32 %v1564, 0.0
    %v1573 = vpack.c.bf16 %v1570, %v1567
    %v1574 = vpack.c.bf16 %v1571, %v1568
    %v1575 = vpack.c.bf16 %v1572, %v1569
    %v1576 = vld [vmem:[%s3] sm:$0xf]
    %v1577 = vld [vmem:[%s3 + $0x4] sm:$0xf]
    %v1578 = vld [vmem:[%s3 + $0x8] sm:$0xf]
    %v1579 = vld [vmem:[%s3 + $0xc] sm:$0xf]
    %v1580 = vld [vmem:[%s3 + $0x10] sm:$0xf]
    %v1581 = vld [vmem:[%s3 + $0x14] sm:$0xf]
    %v1582 = vld [vmem:[%s3 + $0x18] sm:$0xf]
    %v1583 = vld [vmem:[%s3 + $0x1c] sm:$0xf]
    %v1584 = vld [vmem:[%s3 + $0x20] sm:$0xf]
    %v1585 = vld [vmem:[%s3 + $0x24] sm:$0xf]
    %v1586 = vld [vmem:[%s3 + $0x28] sm:$0xf]
    %v1587 = vld [vmem:[%s3 + $0x2c] sm:$0xf]
    %v1588 = vld [vmem:[%s3 + $0x30] sm:$0xf]
    %v1589 = vld [vmem:[%s3 + $0x34] sm:$0xf]
    %v1590 = vld [vmem:[%s3 + $0x38] sm:$0xf]
    %v1591 = vld [vmem:[%s3 + $0x3c] sm:$0xf]
    %v1592 = vld [vmem:[%s3 + $0x40] sm:$0xf]
    %v1593 = vld [vmem:[%s3 + $0x44] sm:$0xf]
    %v1594 = vld [vmem:[%s3 + $0x48] sm:$0xf]
    %v1595 = vld [vmem:[%s3 + $0x4c] sm:$0xf]
    %v1596 = vld [vmem:[%s3 + $0x50] sm:$0xf]
    %v1597 = vld [vmem:[%s3 + $0x54] sm:$0xf]
    %v1598 = vld [vmem:[%s3 + $0x58] sm:$0xf]
    %v1599 = vld [vmem:[%s3 + $0x5c] sm:$0xf]
    %v1600 = vld [vmem:[%s3 + $0x60] sm:$0xf]
    %v1601 = vld [vmem:[%s3 + $0x64] sm:$0xf]
    %v1602 = vld [vmem:[%s3 + $0x68] sm:$0xf]
    %v1603 = vld [vmem:[%s3 + $0x6c] sm:$0xf]
    %v1604 = vld [vmem:[%s3 + $0x70] sm:$0xf]
    %v1605 = vld [vmem:[%s3 + $0x74] sm:$0xf]
    %v1606 = vld [vmem:[%s3 + $0x78] sm:$0xf]
    %v1607 = vld [vmem:[%s3 + $0x7c] sm:$0xf]
    %v1608 = vld [vmem:[%s3 + $0x80] sm:$0xf]
    %v1609 = vld [vmem:[%s3 + $0x84] sm:$0xf]
    %v1610 = vld [vmem:[%s3 + $0x88] sm:$0xf]
    %v1611 = vld [vmem:[%s3 + $0x8c] sm:$0xf]
    %v1612 = vld [vmem:[%s3 + $0x90] sm:$0xf]
    %v1613 = vld [vmem:[%s3 + $0x94] sm:$0xf]
    %v1614 = vld [vmem:[%s3 + $0x98] sm:$0xf]
    %v1615 = vld [vmem:[%s3 + $0x9c] sm:$0xf]
    %v1616 = vld [vmem:[%s3 + $0xa0] sm:$0xf]
    %v1617 = vld [vmem:[%s3 + $0xa4] sm:$0xf]
    %v1618 = vld [vmem:[%s3 + $0xa8] sm:$0xf]
    %v1619 = vld [vmem:[%s3 + $0xac] sm:$0xf]
    %v1620 = vld [vmem:[%s3 + $0xb0] sm:$0xf]
    %v1621 = vld [vmem:[%s3 + $0xb4] sm:$0xf]
    %v1622 = vld [vmem:[%s3 + $0xb8] sm:$0xf]
    %v1623 = vld [vmem:[%s3 + $0xbc] sm:$0xf]
    %v1624 = vld [vmem:[%s4] sm:$0x1]
    %v1626 = vlaneseq
    %v1627 = vshrl.u32 %v1626, 7
    %v1628 = vsub.s32 0, %v1627
    %v1629 = vrot.slane %v1624, %v1628
    %v1679 = vunpack.c.l.b16 %v1576
    %v1680 = vunpack.c.l.b16 %v1577
    %v1681 = vunpack.c.l.b16 %v1578
    %v1682 = vunpack.c.l.b16 %v1579
    %v1683 = vunpack.c.l.b16 %v1580
    %v1684 = vunpack.c.l.b16 %v1581
    %v1685 = vunpack.c.l.b16 %v1582
    %v1686 = vunpack.c.l.b16 %v1583
    %v1687 = vunpack.c.l.b16 %v1584
    %v1688 = vunpack.c.l.b16 %v1585
    %v1689 = vunpack.c.l.b16 %v1586
    %v1690 = vunpack.c.l.b16 %v1587
    %v1691 = vunpack.c.l.b16 %v1588
    %v1692 = vunpack.c.l.b16 %v1589
    %v1693 = vunpack.c.l.b16 %v1590
    %v1694 = vunpack.c.l.b16 %v1591
    %v1695 = vunpack.c.l.b16 %v1592
    %v1696 = vunpack.c.l.b16 %v1593
    %v1697 = vunpack.c.l.b16 %v1594
    %v1698 = vunpack.c.l.b16 %v1595
    %v1699 = vunpack.c.l.b16 %v1596
    %v1700 = vunpack.c.l.b16 %v1597
    %v1701 = vunpack.c.l.b16 %v1598
    %v1702 = vunpack.c.l.b16 %v1599
    %v1703 = vunpack.c.l.b16 %v1600
    %v1704 = vunpack.c.l.b16 %v1601
    %v1705 = vunpack.c.l.b16 %v1602
    %v1706 = vunpack.c.l.b16 %v1603
    %v1707 = vunpack.c.l.b16 %v1604
    %v1708 = vunpack.c.l.b16 %v1605
    %v1709 = vunpack.c.l.b16 %v1606
    %v1710 = vunpack.c.l.b16 %v1607
    %v1711 = vunpack.c.l.b16 %v1608
    %v1712 = vunpack.c.l.b16 %v1609
    %v1713 = vunpack.c.l.b16 %v1610
    %v1714 = vunpack.c.l.b16 %v1611
    %v1715 = vunpack.c.l.b16 %v1612
    %v1716 = vunpack.c.l.b16 %v1613
    %v1717 = vunpack.c.l.b16 %v1614
    %v1718 = vunpack.c.l.b16 %v1615
    %v1719 = vunpack.c.l.b16 %v1616
    %v1720 = vunpack.c.l.b16 %v1617
    %v1721 = vunpack.c.l.b16 %v1618
    %v1722 = vunpack.c.l.b16 %v1619
    %v1723 = vunpack.c.l.b16 %v1620
    %v1724 = vunpack.c.l.b16 %v1621
    %v1725 = vunpack.c.l.b16 %v1622
    %v1726 = vunpack.c.l.b16 %v1623
    %v1727 = vpack.c.b16 %v1680, %v1679
    %v1728 = vpack.c.b16 %v1682, %v1681
    %v1729 = vpack.c.b16 %v1684, %v1683
    %v1730 = vpack.c.b16 %v1686, %v1685
    %v1731 = vpack.c.b16 %v1688, %v1687
    %v1732 = vpack.c.b16 %v1690, %v1689
    %v1733 = vpack.c.b16 %v1692, %v1691
    %v1734 = vpack.c.b16 %v1694, %v1693
    %v1735 = vpack.c.b16 %v1696, %v1695
    %v1736 = vpack.c.b16 %v1698, %v1697
    %v1737 = vpack.c.b16 %v1700, %v1699
    %v1738 = vpack.c.b16 %v1702, %v1701
    %v1739 = vpack.c.b16 %v1704, %v1703
    %v1740 = vpack.c.b16 %v1706, %v1705
    %v1741 = vpack.c.b16 %v1708, %v1707
    %v1742 = vpack.c.b16 %v1710, %v1709
    %v1743 = vpack.c.b16 %v1712, %v1711
    %v1744 = vpack.c.b16 %v1714, %v1713
    %v1745 = vpack.c.b16 %v1716, %v1715
    %v1746 = vpack.c.b16 %v1718, %v1717
    %v1747 = vpack.c.b16 %v1720, %v1719
    %v1748 = vpack.c.b16 %v1722, %v1721
    %v1749 = vpack.c.b16 %v1724, %v1723
    %v1750 = vpack.c.b16 %v1726, %v1725
    %1775 = vmatprep.subr.bf16.mxu0 0
    %1776 = vmatpush1.bf16.msra.mxu0 %v1727
    %1777 = vmatprep.subr.bf16.mxu0 0
    %1778 = vmatpush1.bf16.msra.mxu0 %v1728
    %1779 = vmatprep.subr.bf16.mxu0 0
    %1780 = vmatpush1.bf16.msra.mxu0 %v1729
    %1781 = vmatprep.subr.bf16.mxu0 0
    %1782 = vmatpush1.bf16.msra.mxu0 %v1730
    %1783 = vmatprep.subr.bf16.mxu0 0
    %1784 = vmatpush1.bf16.msra.mxu0 %v1731
    %1785 = vmatprep.subr.bf16.mxu0 0
    %1786 = vmatpush1.bf16.msra.mxu0 %v1732
    %1787 = vmatprep.subr.bf16.mxu0 0
    %1788 = vmatpush1.bf16.msra.mxu0 %v1733
    %1789 = vmatprep.subr.bf16.mxu0 0
    %1790 = vmatpush1.bf16.msra.mxu0 %v1734
    %1791 = vmatprep.subr.bf16.mxu0 0
    %1792 = vmatpush1.bf16.msra.mxu0 %v1735
    %1793 = vmatprep.subr.bf16.mxu0 0
    %1794 = vmatpush1.bf16.msra.mxu0 %v1736
    %1795 = vmatprep.subr.bf16.mxu0 0
    %1796 = vmatpush1.bf16.msra.mxu0 %v1737
    %1797 = vmatprep.subr.bf16.mxu0 0
    %1798 = vmatpush1.bf16.msra.mxu0 %v1738
    %1799 = vmatprep.subr.bf16.mxu0 0
    %1800 = vmatpush1.bf16.msra.mxu0 %v1739
    %1801 = vmatprep.subr.bf16.mxu0 0
    %1802 = vmatpush1.bf16.msra.mxu0 %v1740
    %1803 = vmatprep.subr.bf16.mxu0 0
    %1804 = vmatpush1.bf16.msra.mxu0 %v1741
    %1805 = vmatprep.subr.bf16.mxu0 0
    %1806 = vmatpush1.bf16.msra.mxu0 %v1742
    %1807 = vmatprep.mubr.bf16.mxu0 %v1574
    %1808 = vmatmul.mubr.bf16.gmra.mrb[0].mxu0 %v1573
    %v1809 = vpop.f32.mrb[0].mxu0
    %v1810 = vadd.f32 %v1629, %v1809
    %v1811 = vpop.f32.mrb[0].mxu0
    %v1812 = vpop.f32.mrb[0].mxu0
    %v1813 = vadd.f32 %v1629, %v1812
    %v1814 = vpop.f32.mrb[0].mxu0
    %1815 = vdwg.mxu0
    %1816 = vmatprep.subr.bf16.mxu0 0
    %1817 = vmatpush1.bf16.msra.mxu0 %v1743
    %1818 = vmatprep.subr.bf16.mxu0 0
    %1819 = vmatpush1.bf16.msra.mxu0 %v1744
    %1820 = vmatprep.subr.bf16.mxu0 0
    %1821 = vmatpush1.bf16.msra.mxu0 %v1745
    %1822 = vmatprep.subr.bf16.mxu0 0
    %1823 = vmatpush1.bf16.msra.mxu0 %v1746
    %1824 = vmatprep.subr.bf16.mxu0 0
    %1825 = vmatpush1.bf16.msra.mxu0 %v1747
    %1826 = vmatprep.subr.bf16.mxu0 0
    %1827 = vmatpush1.bf16.msra.mxu0 %v1748
    %1828 = vmatprep.subr.bf16.mxu0 0
    %1829 = vmatpush1.bf16.msra.mxu0 %v1749
    %1830 = vmatprep.subr.bf16.mxu0 0
    %1831 = vmatpush1.bf16.msra.mxu0 %v1750
    %1832 = vmatprep.subr.bf16.mxu0 0
    %1833 = vmatpush1.bf16.msra.mxu0 0
    %1834 = vmatprep.subr.bf16.mxu0 0
    %1835 = vmatpush1.bf16.msra.mxu0 0
    %1836 = vmatprep.subr.bf16.mxu0 0
    %1837 = vmatpush1.bf16.msra.mxu0 0
    %1838 = vmatprep.subr.bf16.mxu0 0
    %1839 = vmatpush1.bf16.msra.mxu0 0
    %1840 = vmatprep.subr.bf16.mxu0 0
    %1841 = vmatpush1.bf16.msra.mxu0 0
    %1842 = vmatprep.subr.bf16.mxu0 0
    %1843 = vmatpush1.bf16.msra.mxu0 0
    %1844 = vmatprep.subr.bf16.mxu0 0
    %1845 = vmatpush1.bf16.msra.mxu0 0
    %1846 = vmatprep.subr.bf16.mxu0 0
    %1847 = vmatpush1.bf16.msra.mxu0 0
    %1848 = vmatprep.mubr.bf16.mxu0 0
    %1849 = vmatmul.mubr.bf16.gmra.mrb[0].mxu0 %v1575
    %v1850 = vpop.f32.mrb[0].mxu0
    %v1851 = vadd.f32 %v1810, %v1850
    %v1852 = vpop.f32.mrb[0].mxu0
    %v1853 = vpop.f32.mrb[0].mxu0
    %v1854 = vadd.f32 %v1813, %v1853
    %v1855 = vpop.f32.mrb[0].mxu0
    %1856 = vdwg.mxu0
    %v1857 = vpack.c.bf16 %v1854, %v1851
    %v1859 = vcombine.high %v1857, %v1857
    %v1861 = vunpack.c.l.s4 1966171168
    %v1862 = vunpack.c.0.s8 %v1861
    %v1863 = vlaneseq
    %v1864 = vshrl.u32 %v1863, 7
    %v1865 = vsub.s32 %v1862, %v1864
    %v1866 = vrot.slane %v1857, %v1865
    %v1868 = vunpack.c.l.s4 1966171168
    %v1869 = vunpack.c.0.s8 %v1868
    %v1870 = vlaneseq
    %v1871 = vshrl.u32 %v1870, 7
    %v1872 = vsub.s32 %v1869, %v1871
    %v1873 = vrot.slane %v1859, %v1872
    %v1874 = vcombine.high %v1866, %v1866
    %v1875 = vcombine.high %v1873, %v1873
    %v1877 = vunpack.c.l.s4 1966171168
    %v1878 = vunpack.c.0.s8 %v1877
    %v1879 = vlaneseq
    %v1880 = vshrl.u32 %v1879, 7
    %v1881 = vsub.s32 %v1878, %v1880
    %v1882 = vrot.slane %v1866, %v1881
    %v1884 = vunpack.c.l.s4 1966171168
    %v1885 = vunpack.c.0.s8 %v1884
    %v1886 = vlaneseq
    %v1887 = vshrl.u32 %v1886, 7
    %v1888 = vsub.s32 %v1885, %v1887
    %v1889 = vrot.slane %v1873, %v1888
    %v1891 = vunpack.c.l.s4 1966171168
    %v1892 = vunpack.c.0.s8 %v1891
    %v1893 = vlaneseq
    %v1894 = vshrl.u32 %v1893, 7
    %v1895 = vsub.s32 %v1892, %v1894
    %v1896 = vrot.slane %v1874, %v1895
    %v1898 = vunpack.c.l.s4 1966171168
    %v1899 = vunpack.c.0.s8 %v1898
    %v1900 = vlaneseq
    %v1901 = vshrl.u32 %v1900, 7
    %v1902 = vsub.s32 %v1899, %v1901
    %v1903 = vrot.slane %v1875, %v1902
    %v1904 = vcombine.high %v1882, %v1882
    %v1905 = vcombine.high %v1889, %v1889
    %v1906 = vcombine.high %v1896, %v1896
    %v1907 = vcombine.high %v1903, %v1903
    %1916 = vst [vmem:[#allocation4] sm:$0x1] %v1882
    %1917 = vst [vmem:[#allocation4 + $0x1] sm:$0x1] %v1896
    %1918 = vst [vmem:[#allocation4 + $0x2] sm:$0x1] %v1904
    %1919 = vst [vmem:[#allocation4 + $0x3] sm:$0x1] %v1906
    %1920 = vst [vmem:[#allocation4 + $0x4] sm:$0x1] %v1889
    %1921 = vst [vmem:[#allocation4 + $0x5] sm:$0x1] %v1903
    %1922 = vst [vmem:[#allocation4 + $0x6] sm:$0x1] %v1905
    %1923 = vst [vmem:[#allocation4 + $0x7] sm:$0x1] %v1907
    // Predicated region
    $region26: #{lenet300_hidden_only.1} parent=1 // pred_check
      _
    $region27: #{lenet300_hidden_only.1} parent=1 // pred_check_branch
      %1925 = sbr.rel (0) target = $region29
    $region28: #{lenet300_hidden_only.1} parent=1 // pred_region
      // Predicated region
      $region30: #{lenet300_hidden_only.1} parent=28 // pred_check
        _
      $region31: #{lenet300_hidden_only.1} parent=28 // pred_check_branch
        %1927 = sbr.rel (0) target = $region33
      $region32: #{lenet300_hidden_only.1} parent=28 // pred_region
        // Predicated region
        $region34: #{lenet300_hidden_only.1} parent=32 // pred_check
          _
        $region35: #{lenet300_hidden_only.1} parent=32 // pred_check_branch
          %1929 = sbr.rel target = $region37
        $region36: #{lenet300_hidden_only.1} parent=32 // pred_region
          // Predicated region
          $region49: #{lenet300_hidden_only.1} parent=36 // pred_check
            _
          $region50: #{lenet300_hidden_only.1} parent=36 // pred_check_branch
            %1944 = sbr.rel (0) target = $region52
          $region51: #{lenet300_hidden_only.1} parent=36 // pred_region
            loop: start=0, step=1, limit=1
            $region53: #{lenet300_hidden_only.1} parent=51 // loop_pre_header
              _
            $region54: #{lenet300_hidden_only.1} parent=51 // loop_header
              %s1947 = sphi 0, %s1951
              %p1948 = scmp.ge.s32.totalorder %s1947, 1
              %s1952 = sphi [#allocation4], [#allocation4]
              %s1953 = sphi %s5, %s5
            $region55: #{lenet300_hidden_only.1} parent=51 // loop_header_branch
              %1950 = sbr.rel (%p1948) target = $region59
            $region56: #{lenet300_hidden_only.1} parent=51 // loop_body
              %v1954 = vld [vmem:[%s1952] sm:$0x1]
              %1955 = vst [vmem:[%s1953] sm:$0x1] %v1954
            $region57: #{lenet300_hidden_only.1} parent=51 // loop_footer
              %s1951 = sadd.s32 1, %s1947
            $region58: #{lenet300_hidden_only.1} parent=51 // loop_footer_branch
              %1946 = sbr.rel target = $region54
            $region59: #{lenet300_hidden_only.1} parent=51 // loop_exit
              _
          $region52: #{lenet300_hidden_only.1} parent=36 // pred_fallthru
            _
        $region37: #{lenet300_hidden_only.1} parent=32 // pred_fallthru
          _
        // Predicated region
        $region38: #{lenet300_hidden_only.1} parent=32 // pred_check
          _
        $region39: #{lenet300_hidden_only.1} parent=32 // pred_check_branch
          %1931 = sbr.rel (0) target = $region41
        $region40: #{lenet300_hidden_only.1} parent=32 // pred_region
          loop: start=0, step=1, limit=1
          $region42: #{lenet300_hidden_only.1} parent=40 // loop_pre_header
            _
          $region43: #{lenet300_hidden_only.1} parent=40 // loop_header
            %s1934 = sphi 0, %s1938
            %p1935 = scmp.ge.s32.totalorder %s1934, 1
            %s1939 = sphi [#allocation4], [#allocation4]
            %s1940 = sphi %s5, %s5
          $region44: #{lenet300_hidden_only.1} parent=40 // loop_header_branch
            %1937 = sbr.rel (%p1935) target = $region48
          $region45: #{lenet300_hidden_only.1} parent=40 // loop_body
            %v1941 = vld [vmem:[%s1939] sm:$0x1]
            %1942 = vst [vmem:[%s1940] sm:$0x1] %v1941
          $region46: #{lenet300_hidden_only.1} parent=40 // loop_footer
            %s1938 = sadd.s32 1, %s1934
          $region47: #{lenet300_hidden_only.1} parent=40 // loop_footer_branch
            %1933 = sbr.rel target = $region43
          $region48: #{lenet300_hidden_only.1} parent=40 // loop_exit
            _
        $region41: #{lenet300_hidden_only.1} parent=32 // pred_fallthru
          _
      $region33: #{lenet300_hidden_only.1} parent=28 // pred_fallthru
        _
      %1956 = vnop
    $region29: #{lenet300_hidden_only.1} parent=1 // pred_fallthru
      _
    // Predicated region
    $region60: #{lenet300_hidden_only.1} parent=1 // pred_check
      _
    $region61: #{lenet300_hidden_only.1} parent=1 // pred_check_branch
      %1958 = sbr.rel (0) target = $region63
    $region62: #{lenet300_hidden_only.1} parent=1 // pred_region
      _
    $region63: #{lenet300_hidden_only.1} parent=1 // pred_fallthru
      _
    %1959 = vsyncpa [#allocation3], 1

</llo_original>
